<compile_context>
chip_gen: v5e
topology: v5e:2x2
jax: 0.10.0
libtpu: 0.0.40
codegen_flags: <defaults>
</compile_context>

<pallas_src>
import jax
import jax.numpy as jnp
from jax import lax
from jax.experimental import pallas as pl
from jax.experimental.pallas import tpu as pltpu

HIDDEN_SIZE = 16
INPUT_SIZE = 1   # kernel assumes I == 1 (broadcast multiply for the input proj)
OUTPUT_SIZE = 1


def _rnn_kernel(x_ref, w_ih_ref, w_hh_ref, b_ih_ref, b_hh_ref,
                w_fc_ref, b_fc_ref, out_ref, xproj_ref):
    """Full forward pass: tanh-RNN over time, then Linear on the last hidden.

    x_ref:     (T, B, 1)  time-major input (I == 1)
    w_ih_ref:  (1, H)     input->hidden weight (pre-transposed, I == 1)
    w_hh_ref:  (H, H)     hidden->hidden weight (pre-transposed)
    b_ih_ref:  (1, H)
    b_hh_ref:  (1, H)
    w_fc_ref:  (H, O)     fc weight (pre-transposed)
    b_fc_ref:  (1, O)
    out_ref:   (B, O)
    xproj_ref: (T, B, H)  VMEM scratch holding the hoisted input projections
    """
    T, B, _ = x_ref.shape
    H = w_hh_ref.shape[0]

    # ---- Hoisted input projection (one shot, off the recurrent chain). ----
    # With I == 1, x @ w_ih is a degenerate outer product -> broadcast multiply.
    bias = b_ih_ref[...] + b_hh_ref[...]                       # (1, H)
    xproj_ref[...] = (x_ref[...] * w_ih_ref[...][None, :, :]   # (T,B,1)*(1,1,H)
                      + bias[None, :, :])                      # -> (T, B, H)

    # ---- Hoisted, loop-invariant rows of the recurrent weight. ----
    w_hh = w_hh_ref[...]                                       # (H, H)
    w_rows = [w_hh[k:k + 1, :] for k in range(H)]              # each (1, H)

    # ---- Recurrence: h_{t+1} = tanh(xproj[t] + h_t @ w_hh). ----
    # 16x16 is <2% of an MXU tile; do it as H broadcast MACs on the VPU with a
    # pairwise tree-sum (depth ~log2(H+1)) so the serial chain stays short.
    def step(t, h):
        terms = [xproj_ref[t]]                                 # (B, H), no h-dep
        for k in range(H):
            terms.append(h[:, k:k + 1] * w_rows[k])            # lane-bcast MAC
        while len(terms) > 1:                                  # tree reduction
            nxt = [terms[i] + terms[i + 1] for i in range(0, len(terms) - 1, 2)]
            if len(terms) % 2:
                nxt.append(terms[-1])
            terms = nxt
        return jnp.tanh(terms[0])                              # EUP

    h0 = jnp.zeros((B, H), jnp.float32)                        # PyTorch default h_0
    h_T = lax.fori_loop(0, T, step, h0, unroll=True)

    # fc(out[:, -1, :]) == fc(h_T); single tiny dot, off the recurrent chain.
    out_ref[...] = (jnp.dot(h_T, w_fc_ref[...],
                            preferred_element_type=jnp.float32)
                    + b_fc_ref[...])


@jax.jit
def simple_rnn_forward(x, w_ih, w_hh, b_ih, b_hh, w_fc, b_fc):
    """x: (B, T, I) float32, weights in PyTorch layout:
       w_ih: (H, I), w_hh: (H, H), b_ih: (H,), b_hh: (H,),
       w_fc: (O, H), b_fc: (O,).  Returns (B, O)."""
    B, T, I = x.shape
    H = w_hh.shape[0]
    O = w_fc.shape[0]

    # Glue: layout plumbing only (time-major transpose, pre-transposed weights).
    x_tm = jnp.transpose(x, (1, 0, 2)).astype(jnp.float32)     # (T, B, I)
    w_ih_t = w_ih.T.astype(jnp.float32)                        # (I, H)
    w_hh_t = w_hh.T.astype(jnp.float32)                        # (H, H)
    w_fc_t = w_fc.T.astype(jnp.float32)                        # (H, O)
    b_ih_2d = b_ih.reshape(1, H).astype(jnp.float32)
    b_hh_2d = b_hh.reshape(1, H).astype(jnp.float32)
    b_fc_2d = b_fc.reshape(1, O).astype(jnp.float32)

    vmem = pl.BlockSpec(memory_space=pltpu.MemorySpace.VMEM)

    return pl.pallas_call(
        _rnn_kernel,
        out_shape=jax.ShapeDtypeStruct((B, O), jnp.float32),
        in_specs=[vmem] * 7,
        out_specs=vmem,
        scratch_shapes=[pltpu.VMEM((T, B, H), jnp.float32)],   # hoisted xproj
    )(x_tm, w_ih_t, w_hh_t, b_ih_2d, b_hh_2d, w_fc_t, b_fc_2d)


def _reference_forward(x, w_ih, w_hh, b_ih, b_hh, w_fc, b_fc):
    """Pure-JAX reference mirroring torch nn.RNN(tanh) + Linear."""
    B, T, I = x.shape
    H = w_hh.shape[0]
    h = jnp.zeros((B, H), jnp.float32)
    for t in range(T):
        h = jnp.tanh(x[:, t, :] @ w_ih.T + b_ih + h @ w_hh.T + b_hh)
    return h @ w_fc.T + b_fc


if __name__ == "__main__":
    key = jax.random.PRNGKey(0)
    kx, k1, k2, k3, k4, k5, k6 = jax.random.split(key, 7)

    B, T = 2, 8
    H, I, O = HIDDEN_SIZE, INPUT_SIZE, OUTPUT_SIZE

    # Deterministic parameter init (PyTorch-style uniform(-1/sqrt(H), 1/sqrt(H))).
    bound = 1.0 / jnp.sqrt(jnp.float32(H))
    w_ih = jax.random.uniform(k1, (H, I), jnp.float32, -bound, bound)
    w_hh = jax.random.uniform(k2, (H, H), jnp.float32, -bound, bound)
    b_ih = jax.random.uniform(k3, (H,), jnp.float32, -bound, bound)
    b_hh = jax.random.uniform(k4, (H,), jnp.float32, -bound, bound)
    w_fc = jax.random.uniform(k5, (O, H), jnp.float32, -bound, bound)
    b_fc = jax.random.uniform(k6, (O,), jnp.float32, -bound, bound)

    x = jax.random.normal(kx, (B, T, I), jnp.float32)

    out = simple_rnn_forward(x, w_ih, w_hh, b_ih, b_hh, w_fc, b_fc)
    out = jax.block_until_ready(out)

    ref = _reference_forward(x, w_ih, w_hh, b_ih, b_hh, w_fc, b_fc)
    assert out.shape == (B, O)
    assert jnp.allclose(out, ref, rtol=1e-4, atol=1e-5), (out, ref)

    print("KERNEL_OK")
</pallas_src>

<mosaic_0001>
module attributes {stable_mosaic.version = 11 : i64} {
  func.func @_rnn_kernel(%arg0: memref<8x2x1xf32, #tpu.memory_space<vmem>>, %arg1: memref<1x16xf32, #tpu.memory_space<vmem>>, %arg2: memref<16x16xf32, #tpu.memory_space<vmem>>, %arg3: memref<1x16xf32, #tpu.memory_space<vmem>>, %arg4: memref<1x16xf32, #tpu.memory_space<vmem>>, %arg5: memref<16x1xf32, #tpu.memory_space<vmem>>, %arg6: memref<1x1xf32, #tpu.memory_space<vmem>>, %arg7: memref<2x1xf32, #tpu.memory_space<vmem>>, %arg8: memref<8x2x16xf32, #tpu.memory_space<vmem>>) attributes {dimension_semantics = [], scalar_prefetch = 0 : i64, scratch_operands = 1 : i64, tpu.core_type = #tpu.core_type<tc>} {
    %c0 = arith.constant 0 : index
    %c0_0 = arith.constant 0 : index
    %0 = vector.load %arg3[%c0, %c0_0] : memref<1x16xf32, #tpu.memory_space<vmem>>, vector<1x16xf32>
    %c0_1 = arith.constant 0 : index
    %c0_2 = arith.constant 0 : index
    %1 = vector.load %arg4[%c0_1, %c0_2] : memref<1x16xf32, #tpu.memory_space<vmem>>, vector<1x16xf32>
    %2 = arith.addf %0, %1 : vector<1x16xf32>
    %c0_3 = arith.constant 0 : index
    %c0_4 = arith.constant 0 : index
    %c0_5 = arith.constant 0 : index
    %3 = vector.load %arg0[%c0_3, %c0_4, %c0_5] : memref<8x2x1xf32, #tpu.memory_space<vmem>>, vector<8x2x1xf32>
    %c0_6 = arith.constant 0 : index
    %c0_7 = arith.constant 0 : index
    %4 = vector.load %arg1[%c0_6, %c0_7] : memref<1x16xf32, #tpu.memory_space<vmem>>, vector<1x16xf32>
    %5 = vector.shape_cast %4 : vector<1x16xf32> to vector<1x1x16xf32>
    %6 = vector.broadcast %3 : vector<8x2x1xf32> to vector<8x2x16xf32>
    %7 = vector.broadcast %5 : vector<1x1x16xf32> to vector<8x2x16xf32>
    %8 = arith.mulf %6, %7 : vector<8x2x16xf32>
    %9 = vector.shape_cast %2 : vector<1x16xf32> to vector<1x1x16xf32>
    %10 = vector.broadcast %9 : vector<1x1x16xf32> to vector<8x2x16xf32>
    %11 = arith.addf %8, %10 : vector<8x2x16xf32>
    %c0_8 = arith.constant 0 : index
    %c0_9 = arith.constant 0 : index
    %c0_10 = arith.constant 0 : index
    %12 = vector.load %arg8[%c0_8, %c0_9, %c0_10] : memref<8x2x16xf32, #tpu.memory_space<vmem>>, vector<8x2x16xf32>
    tpu.vector_store %arg8[%c0_8, %c0_9, %c0_10], %11 {strides = array<i32>} : memref<8x2x16xf32, #tpu.memory_space<vmem>>, vector<8x2x16xf32>,
    %c0_11 = arith.constant 0 : index
    %c0_12 = arith.constant 0 : index
    %13 = vector.load %arg2[%c0_11, %c0_12] : memref<16x16xf32, #tpu.memory_space<vmem>>, vector<16x16xf32>
    %14 = vector.extract_strided_slice %13 {offsets = [0, 0], sizes = [1, 16], strides = [1, 1]} : vector<16x16xf32> to vector<1x16xf32>
    %15 = vector.extract_strided_slice %13 {offsets = [1, 0], sizes = [1, 16], strides = [1, 1]} : vector<16x16xf32> to vector<1x16xf32>
    %16 = vector.extract_strided_slice %13 {offsets = [2, 0], sizes = [1, 16], strides = [1, 1]} : vector<16x16xf32> to vector<1x16xf32>
    %17 = vector.extract_strided_slice %13 {offsets = [3, 0], sizes = [1, 16], strides = [1, 1]} : vector<16x16xf32> to vector<1x16xf32>
    %18 = vector.extract_strided_slice %13 {offsets = [4, 0], sizes = [1, 16], strides = [1, 1]} : vector<16x16xf32> to vector<1x16xf32>
    %19 = vector.extract_strided_slice %13 {offsets = [5, 0], sizes = [1, 16], strides = [1, 1]} : vector<16x16xf32> to vector<1x16xf32>
    %20 = vector.extract_strided_slice %13 {offsets = [6, 0], sizes = [1, 16], strides = [1, 1]} : vector<16x16xf32> to vector<1x16xf32>
    %21 = vector.extract_strided_slice %13 {offsets = [7, 0], sizes = [1, 16], strides = [1, 1]} : vector<16x16xf32> to vector<1x16xf32>
    %22 = vector.extract_strided_slice %13 {offsets = [8, 0], sizes = [1, 16], strides = [1, 1]} : vector<16x16xf32> to vector<1x16xf32>
    %23 = vector.extract_strided_slice %13 {offsets = [9, 0], sizes = [1, 16], strides = [1, 1]} : vector<16x16xf32> to vector<1x16xf32>
    %24 = vector.extract_strided_slice %13 {offsets = [10, 0], sizes = [1, 16], strides = [1, 1]} : vector<16x16xf32> to vector<1x16xf32>
    %25 = vector.extract_strided_slice %13 {offsets = [11, 0], sizes = [1, 16], strides = [1, 1]} : vector<16x16xf32> to vector<1x16xf32>
    %26 = vector.extract_strided_slice %13 {offsets = [12, 0], sizes = [1, 16], strides = [1, 1]} : vector<16x16xf32> to vector<1x16xf32>
    %27 = vector.extract_strided_slice %13 {offsets = [13, 0], sizes = [1, 16], strides = [1, 1]} : vector<16x16xf32> to vector<1x16xf32>
    %28 = vector.extract_strided_slice %13 {offsets = [14, 0], sizes = [1, 16], strides = [1, 1]} : vector<16x16xf32> to vector<1x16xf32>
    %29 = vector.extract_strided_slice %13 {offsets = [15, 0], sizes = [1, 16], strides = [1, 1]} : vector<16x16xf32> to vector<1x16xf32>
    %cst = arith.constant 0.000000e+00 : f32
    %30 = vector.broadcast %cst : f32 to vector<2x16xf32>
    %c0_i32 = arith.constant 0 : i32
    %31 = arith.index_cast %c0_i32 : i32 to index
    %c0_13 = arith.constant 0 : index
    %c0_14 = arith.constant 0 : index
    %32 = vector.load %arg8[%31, %c0_13, %c0_14] : memref<8x2x16xf32, #tpu.memory_space<vmem>>, vector<1x2x16xf32>
    %33 = vector.shape_cast %32 : vector<1x2x16xf32> to vector<2x16xf32>
    %34 = vector.extract_strided_slice %30 {offsets = [0, 0], sizes = [2, 1], strides = [1, 1]} : vector<2x16xf32> to vector<2x1xf32>
    %35 = vector.broadcast %34 : vector<2x1xf32> to vector<2x16xf32>
    %36 = vector.broadcast %14 : vector<1x16xf32> to vector<2x16xf32>
    %37 = arith.mulf %35, %36 : vector<2x16xf32>
    %38 = vector.extract_strided_slice %30 {offsets = [0, 1], sizes = [2, 1], strides = [1, 1]} : vector<2x16xf32> to vector<2x1xf32>
    %39 = vector.broadcast %38 : vector<2x1xf32> to vector<2x16xf32>
    %40 = vector.broadcast %15 : vector<1x16xf32> to vector<2x16xf32>
    %41 = arith.mulf %39, %40 : vector<2x16xf32>
    %42 = vector.extract_strided_slice %30 {offsets = [0, 2], sizes = [2, 1], strides = [1, 1]} : vector<2x16xf32> to vector<2x1xf32>
    %43 = vector.broadcast %42 : vector<2x1xf32> to vector<2x16xf32>
    %44 = vector.broadcast %16 : vector<1x16xf32> to vector<2x16xf32>
    %45 = arith.mulf %43, %44 : vector<2x16xf32>
    %46 = vector.extract_strided_slice %30 {offsets = [0, 3], sizes = [2, 1], strides = [1, 1]} : vector<2x16xf32> to vector<2x1xf32>
    %47 = vector.broadcast %46 : vector<2x1xf32> to vector<2x16xf32>
    %48 = vector.broadcast %17 : vector<1x16xf32> to vector<2x16xf32>
    %49 = arith.mulf %47, %48 : vector<2x16xf32>
    %50 = vector.extract_strided_slice %30 {offsets = [0, 4], sizes = [2, 1], strides = [1, 1]} : vector<2x16xf32> to vector<2x1xf32>
    %51 = vector.broadcast %50 : vector<2x1xf32> to vector<2x16xf32>
    %52 = vector.broadcast %18 : vector<1x16xf32> to vector<2x16xf32>
    %53 = arith.mulf %51, %52 : vector<2x16xf32>
    %54 = vector.extract_strided_slice %30 {offsets = [0, 5], sizes = [2, 1], strides = [1, 1]} : vector<2x16xf32> to vector<2x1xf32>
    %55 = vector.broadcast %54 : vector<2x1xf32> to vector<2x16xf32>
    %56 = vector.broadcast %19 : vector<1x16xf32> to vector<2x16xf32>
    %57 = arith.mulf %55, %56 : vector<2x16xf32>
    %58 = vector.extract_strided_slice %30 {offsets = [0, 6], sizes = [2, 1], strides = [1, 1]} : vector<2x16xf32> to vector<2x1xf32>
    %59 = vector.broadcast %58 : vector<2x1xf32> to vector<2x16xf32>
    %60 = vector.broadcast %20 : vector<1x16xf32> to vector<2x16xf32>
    %61 = arith.mulf %59, %60 : vector<2x16xf32>
    %62 = vector.extract_strided_slice %30 {offsets = [0, 7], sizes = [2, 1], strides = [1, 1]} : vector<2x16xf32> to vector<2x1xf32>
    %63 = vector.broadcast %62 : vector<2x1xf32> to vector<2x16xf32>
    %64 = vector.broadcast %21 : vector<1x16xf32> to vector<2x16xf32>
    %65 = arith.mulf %63, %64 : vector<2x16xf32>
    %66 = vector.extract_strided_slice %30 {offsets = [0, 8], sizes = [2, 1], strides = [1, 1]} : vector<2x16xf32> to vector<2x1xf32>
    %67 = vector.broadcast %66 : vector<2x1xf32> to vector<2x16xf32>
    %68 = vector.broadcast %22 : vector<1x16xf32> to vector<2x16xf32>
    %69 = arith.mulf %67, %68 : vector<2x16xf32>
    %70 = vector.extract_strided_slice %30 {offsets = [0, 9], sizes = [2, 1], strides = [1, 1]} : vector<2x16xf32> to vector<2x1xf32>
    %71 = vector.broadcast %70 : vector<2x1xf32> to vector<2x16xf32>
    %72 = vector.broadcast %23 : vector<1x16xf32> to vector<2x16xf32>
    %73 = arith.mulf %71, %72 : vector<2x16xf32>
    %74 = vector.extract_strided_slice %30 {offsets = [0, 10], sizes = [2, 1], strides = [1, 1]} : vector<2x16xf32> to vector<2x1xf32>
    %75 = vector.broadcast %74 : vector<2x1xf32> to vector<2x16xf32>
    %76 = vector.broadcast %24 : vector<1x16xf32> to vector<2x16xf32>
    %77 = arith.mulf %75, %76 : vector<2x16xf32>
    %78 = vector.extract_strided_slice %30 {offsets = [0, 11], sizes = [2, 1], strides = [1, 1]} : vector<2x16xf32> to vector<2x1xf32>
    %79 = vector.broadcast %78 : vector<2x1xf32> to vector<2x16xf32>
    %80 = vector.broadcast %25 : vector<1x16xf32> to vector<2x16xf32>
    %81 = arith.mulf %79, %80 : vector<2x16xf32>
    %82 = vector.extract_strided_slice %30 {offsets = [0, 12], sizes = [2, 1], strides = [1, 1]} : vector<2x16xf32> to vector<2x1xf32>
    %83 = vector.broadcast %82 : vector<2x1xf32> to vector<2x16xf32>
    %84 = vector.broadcast %26 : vector<1x16xf32> to vector<2x16xf32>
    %85 = arith.mulf %83, %84 : vector<2x16xf32>
    %86 = vector.extract_strided_slice %30 {offsets = [0, 13], sizes = [2, 1], strides = [1, 1]} : vector<2x16xf32> to vector<2x1xf32>
    %87 = vector.broadcast %86 : vector<2x1xf32> to vector<2x16xf32>
    %88 = vector.broadcast %27 : vector<1x16xf32> to vector<2x16xf32>
    %89 = arith.mulf %87, %88 : vector<2x16xf32>
    %90 = vector.extract_strided_slice %30 {offsets = [0, 14], sizes = [2, 1], strides = [1, 1]} : vector<2x16xf32> to vector<2x1xf32>
    %91 = vector.broadcast %90 : vector<2x1xf32> to vector<2x16xf32>
    %92 = vector.broadcast %28 : vector<1x16xf32> to vector<2x16xf32>
    %93 = arith.mulf %91, %92 : vector<2x16xf32>
    %94 = vector.extract_strided_slice %30 {offsets = [0, 15], sizes = [2, 1], strides = [1, 1]} : vector<2x16xf32> to vector<2x1xf32>
    %95 = vector.broadcast %94 : vector<2x1xf32> to vector<2x16xf32>
    %96 = vector.broadcast %29 : vector<1x16xf32> to vector<2x16xf32>
    %97 = arith.mulf %95, %96 : vector<2x16xf32>
    %98 = arith.addf %33, %37 : vector<2x16xf32>
    %99 = arith.addf %41, %45 : vector<2x16xf32>
    %100 = arith.addf %49, %53 : vector<2x16xf32>
    %101 = arith.addf %57, %61 : vector<2x16xf32>
    %102 = arith.addf %65, %69 : vector<2x16xf32>
    %103 = arith.addf %73, %77 : vector<2x16xf32>
    %104 = arith.addf %81, %85 : vector<2x16xf32>
    %105 = arith.addf %89, %93 : vector<2x16xf32>
    %106 = arith.addf %98, %99 : vector<2x16xf32>
    %107 = arith.addf %100, %101 : vector<2x16xf32>
    %108 = arith.addf %102, %103 : vector<2x16xf32>
    %109 = arith.addf %104, %105 : vector<2x16xf32>
    %110 = arith.addf %106, %107 : vector<2x16xf32>
    %111 = arith.addf %108, %109 : vector<2x16xf32>
    %112 = arith.addf %110, %111 : vector<2x16xf32>
    %113 = arith.addf %112, %97 : vector<2x16xf32>
    %114 = math.tanh %113 : vector<2x16xf32>
    %c1_i32 = arith.constant 1 : i32
    %115 = arith.index_cast %c1_i32 : i32 to index
    %c0_15 = arith.constant 0 : index
    %c0_16 = arith.constant 0 : index
    %116 = vector.load %arg8[%115, %c0_15, %c0_16] : memref<8x2x16xf32, #tpu.memory_space<vmem>>, vector<1x2x16xf32>
    %117 = vector.shape_cast %116 : vector<1x2x16xf32> to vector<2x16xf32>
    %118 = vector.extract_strided_slice %114 {offsets = [0, 0], sizes = [2, 1], strides = [1, 1]} : vector<2x16xf32> to vector<2x1xf32>
    %119 = vector.broadcast %118 : vector<2x1xf32> to vector<2x16xf32>
    %120 = vector.broadcast %14 : vector<1x16xf32> to vector<2x16xf32>
    %121 = arith.mulf %119, %120 : vector<2x16xf32>
    %122 = vector.extract_strided_slice %114 {offsets = [0, 1], sizes = [2, 1], strides = [1, 1]} : vector<2x16xf32> to vector<2x1xf32>
    %123 = vector.broadcast %122 : vector<2x1xf32> to vector<2x16xf32>
    %124 = vector.broadcast %15 : vector<1x16xf32> to vector<2x16xf32>
    %125 = arith.mulf %123, %124 : vector<2x16xf32>
    %126 = vector.extract_strided_slice %114 {offsets = [0, 2], sizes = [2, 1], strides = [1, 1]} : vector<2x16xf32> to vector<2x1xf32>
    %127 = vector.broadcast %126 : vector<2x1xf32> to vector<2x16xf32>
    %128 = vector.broadcast %16 : vector<1x16xf32> to vector<2x16xf32>
    %129 = arith.mulf %127, %128 : vector<2x16xf32>
    %130 = vector.extract_strided_slice %114 {offsets = [0, 3], sizes = [2, 1], strides = [1, 1]} : vector<2x16xf32> to vector<2x1xf32>
    %131 = vector.broadcast %130 : vector<2x1xf32> to vector<2x16xf32>
    %132 = vector.broadcast %17 : vector<1x16xf32> to vector<2x16xf32>
    %133 = arith.mulf %131, %132 : vector<2x16xf32>
    %134 = vector.extract_strided_slice %114 {offsets = [0, 4], sizes = [2, 1], strides = [1, 1]} : vector<2x16xf32> to vector<2x1xf32>
    %135 = vector.broadcast %134 : vector<2x1xf32> to vector<2x16xf32>
    %136 = vector.broadcast %18 : vector<1x16xf32> to vector<2x16xf32>
    %137 = arith.mulf %135, %136 : vector<2x16xf32>
    %138 = vector.extract_strided_slice %114 {offsets = [0, 5], sizes = [2, 1], strides = [1, 1]} : vector<2x16xf32> to vector<2x1xf32>
    %139 = vector.broadcast %138 : vector<2x1xf32> to vector<2x16xf32>
    %140 = vector.broadcast %19 : vector<1x16xf32> to vector<2x16xf32>
    %141 = arith.mulf %139, %140 : vector<2x16xf32>
    %142 = vector.extract_strided_slice %114 {offsets = [0, 6], sizes = [2, 1], strides = [1, 1]} : vector<2x16xf32> to vector<2x1xf32>
    %143 = vector.broadcast %142 : vector<2x1xf32> to vector<2x16xf32>
    %144 = vector.broadcast %20 : vector<1x16xf32> to vector<2x16xf32>
    %145 = arith.mulf %143, %144 : vector<2x16xf32>
    %146 = vector.extract_strided_slice %114 {offsets = [0, 7], sizes = [2, 1], strides = [1, 1]} : vector<2x16xf32> to vector<2x1xf32>
    %147 = vector.broadcast %146 : vector<2x1xf32> to vector<2x16xf32>
    %148 = vector.broadcast %21 : vector<1x16xf32> to vector<2x16xf32>
    %149 = arith.mulf %147, %148 : vector<2x16xf32>
    %150 = vector.extract_strided_slice %114 {offsets = [0, 8], sizes = [2, 1], strides = [1, 1]} : vector<2x16xf32> to vector<2x1xf32>
    %151 = vector.broadcast %150 : vector<2x1xf32> to vector<2x16xf32>
    %152 = vector.broadcast %22 : vector<1x16xf32> to vector<2x16xf32>
    %153 = arith.mulf %151, %152 : vector<2x16xf32>
    %154 = vector.extract_strided_slice %114 {offsets = [0, 9], sizes = [2, 1], strides = [1, 1]} : vector<2x16xf32> to vector<2x1xf32>
    %155 = vector.broadcast %154 : vector<2x1xf32> to vector<2x16xf32>
    %156 = vector.broadcast %23 : vector<1x16xf32> to vector<2x16xf32>
    %157 = arith.mulf %155, %156 : vector<2x16xf32>
    %158 = vector.extract_strided_slice %114 {offsets = [0, 10], sizes = [2, 1], strides = [1, 1]} : vector<2x16xf32> to vector<2x1xf32>
    %159 = vector.broadcast %158 : vector<2x1xf32> to vector<2x16xf32>
    %160 = vector.broadcast %24 : vector<1x16xf32> to vector<2x16xf32>
    %161 = arith.mulf %159, %160 : vector<2x16xf32>
    %162 = vector.extract_strided_slice %114 {offsets = [0, 11], sizes = [2, 1], strides = [1, 1]} : vector<2x16xf32> to vector<2x1xf32>
    %163 = vector.broadcast %162 : vector<2x1xf32> to vector<2x16xf32>
    %164 = vector.broadcast %25 : vector<1x16xf32> to vector<2x16xf32>
    %165 = arith.mulf %163, %164 : vector<2x16xf32>
    %166 = vector.extract_strided_slice %114 {offsets = [0, 12], sizes = [2, 1], strides = [1, 1]} : vector<2x16xf32> to vector<2x1xf32>
    %167 = vector.broadcast %166 : vector<2x1xf32> to vector<2x16xf32>
    %168 = vector.broadcast %26 : vector<1x16xf32> to vector<2x16xf32>
    %169 = arith.mulf %167, %168 : vector<2x16xf32>
    %170 = vector.extract_strided_slice %114 {offsets = [0, 13], sizes = [2, 1], strides = [1, 1]} : vector<2x16xf32> to vector<2x1xf32>
    %171 = vector.broadcast %170 : vector<2x1xf32> to vector<2x16xf32>
    %172 = vector.broadcast %27 : vector<1x16xf32> to vector<2x16xf32>
    %173 = arith.mulf %171, %172 : vector<2x16xf32>
    %174 = vector.extract_strided_slice %114 {offsets = [0, 14], sizes = [2, 1], strides = [1, 1]} : vector<2x16xf32> to vector<2x1xf32>
    %175 = vector.broadcast %174 : vector<2x1xf32> to vector<2x16xf32>
    %176 = vector.broadcast %28 : vector<1x16xf32> to vector<2x16xf32>
    %177 = arith.mulf %175, %176 : vector<2x16xf32>
    %178 = vector.extract_strided_slice %114 {offsets = [0, 15], sizes = [2, 1], strides = [1, 1]} : vector<2x16xf32> to vector<2x1xf32>
    %179 = vector.broadcast %178 : vector<2x1xf32> to vector<2x16xf32>
    %180 = vector.broadcast %29 : vector<1x16xf32> to vector<2x16xf32>
    %181 = arith.mulf %179, %180 : vector<2x16xf32>
    %182 = arith.addf %117, %121 : vector<2x16xf32>
    %183 = arith.addf %125, %129 : vector<2x16xf32>
    %184 = arith.addf %133, %137 : vector<2x16xf32>
    %185 = arith.addf %141, %145 : vector<2x16xf32>
    %186 = arith.addf %149, %153 : vector<2x16xf32>
    %187 = arith.addf %157, %161 : vector<2x16xf32>
    %188 = arith.addf %165, %169 : vector<2x16xf32>
    %189 = arith.addf %173, %177 : vector<2x16xf32>
    %190 = arith.addf %182, %183 : vector<2x16xf32>
    %191 = arith.addf %184, %185 : vector<2x16xf32>
    %192 = arith.addf %186, %187 : vector<2x16xf32>
    %193 = arith.addf %188, %189 : vector<2x16xf32>
    %194 = arith.addf %190, %191 : vector<2x16xf32>
    %195 = arith.addf %192, %193 : vector<2x16xf32>
    %196 = arith.addf %194, %195 : vector<2x16xf32>
    %197 = arith.addf %196, %181 : vector<2x16xf32>
    %198 = math.tanh %197 : vector<2x16xf32>
    %c2_i32 = arith.constant 2 : i32
    %199 = arith.index_cast %c2_i32 : i32 to index
    %c0_17 = arith.constant 0 : index
    %c0_18 = arith.constant 0 : index
    %200 = vector.load %arg8[%199, %c0_17, %c0_18] : memref<8x2x16xf32, #tpu.memory_space<vmem>>, vector<1x2x16xf32>
    %201 = vector.shape_cast %200 : vector<1x2x16xf32> to vector<2x16xf32>
    %202 = vector.extract_strided_slice %198 {offsets = [0, 0], sizes = [2, 1], strides = [1, 1]} : vector<2x16xf32> to vector<2x1xf32>
    %203 = vector.broadcast %202 : vector<2x1xf32> to vector<2x16xf32>
    %204 = vector.broadcast %14 : vector<1x16xf32> to vector<2x16xf32>
    %205 = arith.mulf %203, %204 : vector<2x16xf32>
    %206 = vector.extract_strided_slice %198 {offsets = [0, 1], sizes = [2, 1], strides = [1, 1]} : vector<2x16xf32> to vector<2x1xf32>
    %207 = vector.broadcast %206 : vector<2x1xf32> to vector<2x16xf32>
    %208 = vector.broadcast %15 : vector<1x16xf32> to vector<2x16xf32>
    %209 = arith.mulf %207, %208 : vector<2x16xf32>
    %210 = vector.extract_strided_slice %198 {offsets = [0, 2], sizes = [2, 1], strides = [1, 1]} : vector<2x16xf32> to vector<2x1xf32>
    %211 = vector.broadcast %210 : vector<2x1xf32> to vector<2x16xf32>
    %212 = vector.broadcast %16 : vector<1x16xf32> to vector<2x16xf32>
    %213 = arith.mulf %211, %212 : vector<2x16xf32>
    %214 = vector.extract_strided_slice %198 {offsets = [0, 3], sizes = [2, 1], strides = [1, 1]} : vector<2x16xf32> to vector<2x1xf32>
    %215 = vector.broadcast %214 : vector<2x1xf32> to vector<2x16xf32>
    %216 = vector.broadcast %17 : vector<1x16xf32> to vector<2x16xf32>
    %217 = arith.mulf %215, %216 : vector<2x16xf32>
    %218 = vector.extract_strided_slice %198 {offsets = [0, 4], sizes = [2, 1], strides = [1, 1]} : vector<2x16xf32> to vector<2x1xf32>
    %219 = vector.broadcast %218 : vector<2x1xf32> to vector<2x16xf32>
    %220 = vector.broadcast %18 : vector<1x16xf32> to vector<2x16xf32>
    %221 = arith.mulf %219, %220 : vector<2x16xf32>
    %222 = vector.extract_strided_slice %198 {offsets = [0, 5], sizes = [2, 1], strides = [1, 1]} : vector<2x16xf32> to vector<2x1xf32>
    %223 = vector.broadcast %222 : vector<2x1xf32> to vector<2x16xf32>
    %224 = vector.broadcast %19 : vector<1x16xf32> to vector<2x16xf32>
    %225 = arith.mulf %223, %224 : vector<2x16xf32>
    %226 = vector.extract_strided_slice %198 {offsets = [0, 6], sizes = [2, 1], strides = [1, 1]} : vector<2x16xf32> to vector<2x1xf32>
    %227 = vector.broadcast %226 : vector<2x1xf32> to vector<2x16xf32>
    %228 = vector.broadcast %20 : vector<1x16xf32> to vector<2x16xf32>
    %229 = arith.mulf %227, %228 : vector<2x16xf32>
    %230 = vector.extract_strided_slice %198 {offsets = [0, 7], sizes = [2, 1], strides = [1, 1]} : vector<2x16xf32> to vector<2x1xf32>
    %231 = vector.broadcast %230 : vector<2x1xf32> to vector<2x16xf32>
    %232 = vector.broadcast %21 : vector<1x16xf32> to vector<2x16xf32>
    %233 = arith.mulf %231, %232 : vector<2x16xf32>
    %234 = vector.extract_strided_slice %198 {offsets = [0, 8], sizes = [2, 1], strides = [1, 1]} : vector<2x16xf32> to vector<2x1xf32>
    %235 = vector.broadcast %234 : vector<2x1xf32> to vector<2x16xf32>
    %236 = vector.broadcast %22 : vector<1x16xf32> to vector<2x16xf32>
    %237 = arith.mulf %235, %236 : vector<2x16xf32>
    %238 = vector.extract_strided_slice %198 {offsets = [0, 9], sizes = [2, 1], strides = [1, 1]} : vector<2x16xf32> to vector<2x1xf32>
    %239 = vector.broadcast %238 : vector<2x1xf32> to vector<2x16xf32>
    %240 = vector.broadcast %23 : vector<1x16xf32> to vector<2x16xf32>
    %241 = arith.mulf %239, %240 : vector<2x16xf32>
    %242 = vector.extract_strided_slice %198 {offsets = [0, 10], sizes = [2, 1], strides = [1, 1]} : vector<2x16xf32> to vector<2x1xf32>
    %243 = vector.broadcast %242 : vector<2x1xf32> to vector<2x16xf32>
    %244 = vector.broadcast %24 : vector<1x16xf32> to vector<2x16xf32>
    %245 = arith.mulf %243, %244 : vector<2x16xf32>
    %246 = vector.extract_strided_slice %198 {offsets = [0, 11], sizes = [2, 1], strides = [1, 1]} : vector<2x16xf32> to vector<2x1xf32>
    %247 = vector.broadcast %246 : vector<2x1xf32> to vector<2x16xf32>
    %248 = vector.broadcast %25 : vector<1x16xf32> to vector<2x16xf32>
    %249 = arith.mulf %247, %248 : vector<2x16xf32>
    %250 = vector.extract_strided_slice %198 {offsets = [0, 12], sizes = [2, 1], strides = [1, 1]} : vector<2x16xf32> to vector<2x1xf32>
    %251 = vector.broadcast %250 : vector<2x1xf32> to vector<2x16xf32>
    %252 = vector.broadcast %26 : vector<1x16xf32> to vector<2x16xf32>
    %253 = arith.mulf %251, %252 : vector<2x16xf32>
    %254 = vector.extract_strided_slice %198 {offsets = [0, 13], sizes = [2, 1], strides = [1, 1]} : vector<2x16xf32> to vector<2x1xf32>
    %255 = vector.broadcast %254 : vector<2x1xf32> to vector<2x16xf32>
    %256 = vector.broadcast %27 : vector<1x16xf32> to vector<2x16xf32>
    %257 = arith.mulf %255, %256 : vector<2x16xf32>
    %258 = vector.extract_strided_slice %198 {offsets = [0, 14], sizes = [2, 1], strides = [1, 1]} : vector<2x16xf32> to vector<2x1xf32>
    %259 = vector.broadcast %258 : vector<2x1xf32> to vector<2x16xf32>
    %260 = vector.broadcast %28 : vector<1x16xf32> to vector<2x16xf32>
    %261 = arith.mulf %259, %260 : vector<2x16xf32>
    %262 = vector.extract_strided_slice %198 {offsets = [0, 15], sizes = [2, 1], strides = [1, 1]} : vector<2x16xf32> to vector<2x1xf32>
    %263 = vector.broadcast %262 : vector<2x1xf32> to vector<2x16xf32>
    %264 = vector.broadcast %29 : vector<1x16xf32> to vector<2x16xf32>
    %265 = arith.mulf %263, %264 : vector<2x16xf32>
    %266 = arith.addf %201, %205 : vector<2x16xf32>
    %267 = arith.addf %209, %213 : vector<2x16xf32>
    %268 = arith.addf %217, %221 : vector<2x16xf32>
    %269 = arith.addf %225, %229 : vector<2x16xf32>
    %270 = arith.addf %233, %237 : vector<2x16xf32>
    %271 = arith.addf %241, %245 : vector<2x16xf32>
    %272 = arith.addf %249, %253 : vector<2x16xf32>
    %273 = arith.addf %257, %261 : vector<2x16xf32>
    %274 = arith.addf %266, %267 : vector<2x16xf32>
    %275 = arith.addf %268, %269 : vector<2x16xf32>
    %276 = arith.addf %270, %271 : vector<2x16xf32>
    %277 = arith.addf %272, %273 : vector<2x16xf32>
    %278 = arith.addf %274, %275 : vector<2x16xf32>
    %279 = arith.addf %276, %277 : vector<2x16xf32>
    %280 = arith.addf %278, %279 : vector<2x16xf32>
    %281 = arith.addf %280, %265 : vector<2x16xf32>
    %282 = math.tanh %281 : vector<2x16xf32>
    %c3_i32 = arith.constant 3 : i32
    %283 = arith.index_cast %c3_i32 : i32 to index
    %c0_19 = arith.constant 0 : index
    %c0_20 = arith.constant 0 : index
    %284 = vector.load %arg8[%283, %c0_19, %c0_20] : memref<8x2x16xf32, #tpu.memory_space<vmem>>, vector<1x2x16xf32>
    %285 = vector.shape_cast %284 : vector<1x2x16xf32> to vector<2x16xf32>
    %286 = vector.extract_strided_slice %282 {offsets = [0, 0], sizes = [2, 1], strides = [1, 1]} : vector<2x16xf32> to vector<2x1xf32>
    %287 = vector.broadcast %286 : vector<2x1xf32> to vector<2x16xf32>
    %288 = vector.broadcast %14 : vector<1x16xf32> to vector<2x16xf32>
    %289 = arith.mulf %287, %288 : vector<2x16xf32>
    %290 = vector.extract_strided_slice %282 {offsets = [0, 1], sizes = [2, 1], strides = [1, 1]} : vector<2x16xf32> to vector<2x1xf32>
    %291 = vector.broadcast %290 : vector<2x1xf32> to vector<2x16xf32>
    %292 = vector.broadcast %15 : vector<1x16xf32> to vector<2x16xf32>
    %293 = arith.mulf %291, %292 : vector<2x16xf32>
    %294 = vector.extract_strided_slice %282 {offsets = [0, 2], sizes = [2, 1], strides = [1, 1]} : vector<2x16xf32> to vector<2x1xf32>
    %295 = vector.broadcast %294 : vector<2x1xf32> to vector<2x16xf32>
    %296 = vector.broadcast %16 : vector<1x16xf32> to vector<2x16xf32>
    %297 = arith.mulf %295, %296 : vector<2x16xf32>
    %298 = vector.extract_strided_slice %282 {offsets = [0, 3], sizes = [2, 1], strides = [1, 1]} : vector<2x16xf32> to vector<2x1xf32>
    %299 = vector.broadcast %298 : vector<2x1xf32> to vector<2x16xf32>
    %300 = vector.broadcast %17 : vector<1x16xf32> to vector<2x16xf32>
    %301 = arith.mulf %299, %300 : vector<2x16xf32>
    %302 = vector.extract_strided_slice %282 {offsets = [0, 4], sizes = [2, 1], strides = [1, 1]} : vector<2x16xf32> to vector<2x1xf32>
    %303 = vector.broadcast %302 : vector<2x1xf32> to vector<2x16xf32>
    %304 = vector.broadcast %18 : vector<1x16xf32> to vector<2x16xf32>
    %305 = arith.mulf %303, %304 : vector<2x16xf32>
    %306 = vector.extract_strided_slice %282 {offsets = [0, 5], sizes = [2, 1], strides = [1, 1]} : vector<2x16xf32> to vector<2x1xf32>
    %307 = vector.broadcast %306 : vector<2x1xf32> to vector<2x16xf32>
    %308 = vector.broadcast %19 : vector<1x16xf32> to vector<2x16xf32>
    %309 = arith.mulf %307, %308 : vector<2x16xf32>
    %310 = vector.extract_strided_slice %282 {offsets = [0, 6], sizes = [2, 1], strides = [1, 1]} : vector<2x16xf32> to vector<2x1xf32>
    %311 = vector.broadcast %310 : vector<2x1xf32> to vector<2x16xf32>
    %312 = vector.broadcast %20 : vector<1x16xf32> to vector<2x16xf32>
    %313 = arith.mulf %311, %312 : vector<2x16xf32>
    %314 = vector.extract_strided_slice %282 {offsets = [0, 7], sizes = [2, 1], strides = [1, 1]} : vector<2x16xf32> to vector<2x1xf32>
    %315 = vector.broadcast %314 : vector<2x1xf32> to vector<2x16xf32>
    %316 = vector.broadcast %21 : vector<1x16xf32> to vector<2x16xf32>
    %317 = arith.mulf %315, %316 : vector<2x16xf32>
    %318 = vector.extract_strided_slice %282 {offsets = [0, 8], sizes = [2, 1], strides = [1, 1]} : vector<2x16xf32> to vector<2x1xf32>
    %319 = vector.broadcast %318 : vector<2x1xf32> to vector<2x16xf32>
    %320 = vector.broadcast %22 : vector<1x16xf32> to vector<2x16xf32>
    %321 = arith.mulf %319, %320 : vector<2x16xf32>
    %322 = vector.extract_strided_slice %282 {offsets = [0, 9], sizes = [2, 1], strides = [1, 1]} : vector<2x16xf32> to vector<2x1xf32>
    %323 = vector.broadcast %322 : vector<2x1xf32> to vector<2x16xf32>
    %324 = vector.broadcast %23 : vector<1x16xf32> to vector<2x16xf32>
    %325 = arith.mulf %323, %324 : vector<2x16xf32>
    %326 = vector.extract_strided_slice %282 {offsets = [0, 10], sizes = [2, 1], strides = [1, 1]} : vector<2x16xf32> to vector<2x1xf32>
    %327 = vector.broadcast %326 : vector<2x1xf32> to vector<2x16xf32>
    %328 = vector.broadcast %24 : vector<1x16xf32> to vector<2x16xf32>
    %329 = arith.mulf %327, %328 : vector<2x16xf32>
    %330 = vector.extract_strided_slice %282 {offsets = [0, 11], sizes = [2, 1], strides = [1, 1]} : vector<2x16xf32> to vector<2x1xf32>
    %331 = vector.broadcast %330 : vector<2x1xf32> to vector<2x16xf32>
    %332 = vector.broadcast %25 : vector<1x16xf32> to vector<2x16xf32>
    %333 = arith.mulf %331, %332 : vector<2x16xf32>
    %334 = vector.extract_strided_slice %282 {offsets = [0, 12], sizes = [2, 1], strides = [1, 1]} : vector<2x16xf32> to vector<2x1xf32>
    %335 = vector.broadcast %334 : vector<2x1xf32> to vector<2x16xf32>
    %336 = vector.broadcast %26 : vector<1x16xf32> to vector<2x16xf32>
    %337 = arith.mulf %335, %336 : vector<2x16xf32>
    %338 = vector.extract_strided_slice %282 {offsets = [0, 13], sizes = [2, 1], strides = [1, 1]} : vector<2x16xf32> to vector<2x1xf32>
    %339 = vector.broadcast %338 : vector<2x1xf32> to vector<2x16xf32>
    %340 = vector.broadcast %27 : vector<1x16xf32> to vector<2x16xf32>
    %341 = arith.mulf %339, %340 : vector<2x16xf32>
    %342 = vector.extract_strided_slice %282 {offsets = [0, 14], sizes = [2, 1], strides = [1, 1]} : vector<2x16xf32> to vector<2x1xf32>
    %343 = vector.broadcast %342 : vector<2x1xf32> to vector<2x16xf32>
    %344 = vector.broadcast %28 : vector<1x16xf32> to vector<2x16xf32>
    %345 = arith.mulf %343, %344 : vector<2x16xf32>
    %346 = vector.extract_strided_slice %282 {offsets = [0, 15], sizes = [2, 1], strides = [1, 1]} : vector<2x16xf32> to vector<2x1xf32>
    %347 = vector.broadcast %346 : vector<2x1xf32> to vector<2x16xf32>
    %348 = vector.broadcast %29 : vector<1x16xf32> to vector<2x16xf32>
    %349 = arith.mulf %347, %348 : vector<2x16xf32>
    %350 = arith.addf %285, %289 : vector<2x16xf32>
    %351 = arith.addf %293, %297 : vector<2x16xf32>
    %352 = arith.addf %301, %305 : vector<2x16xf32>
    %353 = arith.addf %309, %313 : vector<2x16xf32>
    %354 = arith.addf %317, %321 : vector<2x16xf32>
    %355 = arith.addf %325, %329 : vector<2x16xf32>
    %356 = arith.addf %333, %337 : vector<2x16xf32>
    %357 = arith.addf %341, %345 : vector<2x16xf32>
    %358 = arith.addf %350, %351 : vector<2x16xf32>
    %359 = arith.addf %352, %353 : vector<2x16xf32>
    %360 = arith.addf %354, %355 : vector<2x16xf32>
    %361 = arith.addf %356, %357 : vector<2x16xf32>
    %362 = arith.addf %358, %359 : vector<2x16xf32>
    %363 = arith.addf %360, %361 : vector<2x16xf32>
    %364 = arith.addf %362, %363 : vector<2x16xf32>
    %365 = arith.addf %364, %349 : vector<2x16xf32>
    %366 = math.tanh %365 : vector<2x16xf32>
    %c4_i32 = arith.constant 4 : i32
    %367 = arith.index_cast %c4_i32 : i32 to index
    %c0_21 = arith.constant 0 : index
    %c0_22 = arith.constant 0 : index
    %368 = vector.load %arg8[%367, %c0_21, %c0_22] : memref<8x2x16xf32, #tpu.memory_space<vmem>>, vector<1x2x16xf32>
    %369 = vector.shape_cast %368 : vector<1x2x16xf32> to vector<2x16xf32>
    %370 = vector.extract_strided_slice %366 {offsets = [0, 0], sizes = [2, 1], strides = [1, 1]} : vector<2x16xf32> to vector<2x1xf32>
    %371 = vector.broadcast %370 : vector<2x1xf32> to vector<2x16xf32>
    %372 = vector.broadcast %14 : vector<1x16xf32> to vector<2x16xf32>
    %373 = arith.mulf %371, %372 : vector<2x16xf32>
    %374 = vector.extract_strided_slice %366 {offsets = [0, 1], sizes = [2, 1], strides = [1, 1]} : vector<2x16xf32> to vector<2x1xf32>
    %375 = vector.broadcast %374 : vector<2x1xf32> to vector<2x16xf32>
    %376 = vector.broadcast %15 : vector<1x16xf32> to vector<2x16xf32>
    %377 = arith.mulf %375, %376 : vector<2x16xf32>
    %378 = vector.extract_strided_slice %366 {offsets = [0, 2], sizes = [2, 1], strides = [1, 1]} : vector<2x16xf32> to vector<2x1xf32>
    %379 = vector.broadcast %378 : vector<2x1xf32> to vector<2x16xf32>
    %380 = vector.broadcast %16 : vector<1x16xf32> to vector<2x16xf32>
    %381 = arith.mulf %379, %380 : vector<2x16xf32>
    %382 = vector.extract_strided_slice %366 {offsets = [0, 3], sizes = [2, 1], strides = [1, 1]} : vector<2x16xf32> to vector<2x1xf32>
    %383 = vector.broadcast %382 : vector<2x1xf32> to vector<2x16xf32>
    %384 = vector.broadcast %17 : vector<1x16xf32> to vector<2x16xf32>
    %385 = arith.mulf %383, %384 : vector<2x16xf32>
    %386 = vector.extract_strided_slice %366 {offsets = [0, 4], sizes = [2, 1], strides = [1, 1]} : vector<2x16xf32> to vector<2x1xf32>
    %387 = vector.broadcast %386 : vector<2x1xf32> to vector<2x16xf32>
    %388 = vector.broadcast %18 : vector<1x16xf32> to vector<2x16xf32>
    %389 = arith.mulf %387, %388 : vector<2x16xf32>
    %390 = vector.extract_strided_slice %366 {offsets = [0, 5], sizes = [2, 1], strides = [1, 1]} : vector<2x16xf32> to vector<2x1xf32>
    %391 = vector.broadcast %390 : vector<2x1xf32> to vector<2x16xf32>
    %392 = vector.broadcast %19 : vector<1x16xf32> to vector<2x16xf32>
    %393 = arith.mulf %391, %392 : vector<2x16xf32>
    %394 = vector.extract_strided_slice %366 {offsets = [0, 6], sizes = [2, 1], strides = [1, 1]} : vector<2x16xf32> to vector<2x1xf32>
    %395 = vector.broadcast %394 : vector<2x1xf32> to vector<2x16xf32>
    %396 = vector.broadcast %20 : vector<1x16xf32> to vector<2x16xf32>
    %397 = arith.mulf %395, %396 : vector<2x16xf32>
    %398 = vector.extract_strided_slice %366 {offsets = [0, 7], sizes = [2, 1], strides = [1, 1]} : vector<2x16xf32> to vector<2x1xf32>
    %399 = vector.broadcast %398 : vector<2x1xf32> to vector<2x16xf32>
    %400 = vector.broadcast %21 : vector<1x16xf32> to vector<2x16xf32>
    %401 = arith.mulf %399, %400 : vector<2x16xf32>
    %402 = vector.extract_strided_slice %366 {offsets = [0, 8], sizes = [2, 1], strides = [1, 1]} : vector<2x16xf32> to vector<2x1xf32>
    %403 = vector.broadcast %402 : vector<2x1xf32> to vector<2x16xf32>
    %404 = vector.broadcast %22 : vector<1x16xf32> to vector<2x16xf32>
    %405 = arith.mulf %403, %404 : vector<2x16xf32>
    %406 = vector.extract_strided_slice %366 {offsets = [0, 9], sizes = [2, 1], strides = [1, 1]} : vector<2x16xf32> to vector<2x1xf32>
    %407 = vector.broadcast %406 : vector<2x1xf32> to vector<2x16xf32>
    %408 = vector.broadcast %23 : vector<1x16xf32> to vector<2x16xf32>
    %409 = arith.mulf %407, %408 : vector<2x16xf32>
    %410 = vector.extract_strided_slice %366 {offsets = [0, 10], sizes = [2, 1], strides = [1, 1]} : vector<2x16xf32> to vector<2x1xf32>
    %411 = vector.broadcast %410 : vector<2x1xf32> to vector<2x16xf32>
    %412 = vector.broadcast %24 : vector<1x16xf32> to vector<2x16xf32>
    %413 = arith.mulf %411, %412 : vector<2x16xf32>
    %414 = vector.extract_strided_slice %366 {offsets = [0, 11], sizes = [2, 1], strides = [1, 1]} : vector<2x16xf32> to vector<2x1xf32>
    %415 = vector.broadcast %414 : vector<2x1xf32> to vector<2x16xf32>
    %416 = vector.broadcast %25 : vector<1x16xf32> to vector<2x16xf32>
    %417 = arith.mulf %415, %416 : vector<2x16xf32>
    %418 = vector.extract_strided_slice %366 {offsets = [0, 12], sizes = [2, 1], strides = [1, 1]} : vector<2x16xf32> to vector<2x1xf32>
    %419 = vector.broadcast %418 : vector<2x1xf32> to vector<2x16xf32>
    %420 = vector.broadcast %26 : vector<1x16xf32> to vector<2x16xf32>
    %421 = arith.mulf %419, %420 : vector<2x16xf32>
    %422 = vector.extract_strided_slice %366 {offsets = [0, 13], sizes = [2, 1], strides = [1, 1]} : vector<2x16xf32> to vector<2x1xf32>
    %423 = vector.broadcast %422 : vector<2x1xf32> to vector<2x16xf32>
    %424 = vector.broadcast %27 : vector<1x16xf32> to vector<2x16xf32>
    %425 = arith.mulf %423, %424 : vector<2x16xf32>
    %426 = vector.extract_strided_slice %366 {offsets = [0, 14], sizes = [2, 1], strides = [1, 1]} : vector<2x16xf32> to vector<2x1xf32>
    %427 = vector.broadcast %426 : vector<2x1xf32> to vector<2x16xf32>
    %428 = vector.broadcast %28 : vector<1x16xf32> to vector<2x16xf32>
    %429 = arith.mulf %427, %428 : vector<2x16xf32>
    %430 = vector.extract_strided_slice %366 {offsets = [0, 15], sizes = [2, 1], strides = [1, 1]} : vector<2x16xf32> to vector<2x1xf32>
    %431 = vector.broadcast %430 : vector<2x1xf32> to vector<2x16xf32>
    %432 = vector.broadcast %29 : vector<1x16xf32> to vector<2x16xf32>
    %433 = arith.mulf %431, %432 : vector<2x16xf32>
    %434 = arith.addf %369, %373 : vector<2x16xf32>
    %435 = arith.addf %377, %381 : vector<2x16xf32>
    %436 = arith.addf %385, %389 : vector<2x16xf32>
    %437 = arith.addf %393, %397 : vector<2x16xf32>
    %438 = arith.addf %401, %405 : vector<2x16xf32>
    %439 = arith.addf %409, %413 : vector<2x16xf32>
    %440 = arith.addf %417, %421 : vector<2x16xf32>
    %441 = arith.addf %425, %429 : vector<2x16xf32>
    %442 = arith.addf %434, %435 : vector<2x16xf32>
    %443 = arith.addf %436, %437 : vector<2x16xf32>
    %444 = arith.addf %438, %439 : vector<2x16xf32>
    %445 = arith.addf %440, %441 : vector<2x16xf32>
    %446 = arith.addf %442, %443 : vector<2x16xf32>
    %447 = arith.addf %444, %445 : vector<2x16xf32>
    %448 = arith.addf %446, %447 : vector<2x16xf32>
    %449 = arith.addf %448, %433 : vector<2x16xf32>
    %450 = math.tanh %449 : vector<2x16xf32>
    %c5_i32 = arith.constant 5 : i32
    %451 = arith.index_cast %c5_i32 : i32 to index
    %c0_23 = arith.constant 0 : index
    %c0_24 = arith.constant 0 : index
    %452 = vector.load %arg8[%451, %c0_23, %c0_24] : memref<8x2x16xf32, #tpu.memory_space<vmem>>, vector<1x2x16xf32>
    %453 = vector.shape_cast %452 : vector<1x2x16xf32> to vector<2x16xf32>
    %454 = vector.extract_strided_slice %450 {offsets = [0, 0], sizes = [2, 1], strides = [1, 1]} : vector<2x16xf32> to vector<2x1xf32>
    %455 = vector.broadcast %454 : vector<2x1xf32> to vector<2x16xf32>
    %456 = vector.broadcast %14 : vector<1x16xf32> to vector<2x16xf32>
    %457 = arith.mulf %455, %456 : vector<2x16xf32>
    %458 = vector.extract_strided_slice %450 {offsets = [0, 1], sizes = [2, 1], strides = [1, 1]} : vector<2x16xf32> to vector<2x1xf32>
    %459 = vector.broadcast %458 : vector<2x1xf32> to vector<2x16xf32>
    %460 = vector.broadcast %15 : vector<1x16xf32> to vector<2x16xf32>
    %461 = arith.mulf %459, %460 : vector<2x16xf32>
    %462 = vector.extract_strided_slice %450 {offsets = [0, 2], sizes = [2, 1], strides = [1, 1]} : vector<2x16xf32> to vector<2x1xf32>
    %463 = vector.broadcast %462 : vector<2x1xf32> to vector<2x16xf32>
    %464 = vector.broadcast %16 : vector<1x16xf32> to vector<2x16xf32>
    %465 = arith.mulf %463, %464 : vector<2x16xf32>
    %466 = vector.extract_strided_slice %450 {offsets = [0, 3], sizes = [2, 1], strides = [1, 1]} : vector<2x16xf32> to vector<2x1xf32>
    %467 = vector.broadcast %466 : vector<2x1xf32> to vector<2x16xf32>
    %468 = vector.broadcast %17 : vector<1x16xf32> to vector<2x16xf32>
    %469 = arith.mulf %467, %468 : vector<2x16xf32>
    %470 = vector.extract_strided_slice %450 {offsets = [0, 4], sizes = [2, 1], strides = [1, 1]} : vector<2x16xf32> to vector<2x1xf32>
    %471 = vector.broadcast %470 : vector<2x1xf32> to vector<2x16xf32>
    %472 = vector.broadcast %18 : vector<1x16xf32> to vector<2x16xf32>
    %473 = arith.mulf %471, %472 : vector<2x16xf32>
    %474 = vector.extract_strided_slice %450 {offsets = [0, 5], sizes = [2, 1], strides = [1, 1]} : vector<2x16xf32> to vector<2x1xf32>
    %475 = vector.broadcast %474 : vector<2x1xf32> to vector<2x16xf32>
    %476 = vector.broadcast %19 : vector<1x16xf32> to vector<2x16xf32>
    %477 = arith.mulf %475, %476 : vector<2x16xf32>
    %478 = vector.extract_strided_slice %450 {offsets = [0, 6], sizes = [2, 1], strides = [1, 1]} : vector<2x16xf32> to vector<2x1xf32>
    %479 = vector.broadcast %478 : vector<2x1xf32> to vector<2x16xf32>
    %480 = vector.broadcast %20 : vector<1x16xf32> to vector<2x16xf32>
    %481 = arith.mulf %479, %480 : vector<2x16xf32>
    %482 = vector.extract_strided_slice %450 {offsets = [0, 7], sizes = [2, 1], strides = [1, 1]} : vector<2x16xf32> to vector<2x1xf32>
    %483 = vector.broadcast %482 : vector<2x1xf32> to vector<2x16xf32>
    %484 = vector.broadcast %21 : vector<1x16xf32> to vector<2x16xf32>
    %485 = arith.mulf %483, %484 : vector<2x16xf32>
    %486 = vector.extract_strided_slice %450 {offsets = [0, 8], sizes = [2, 1], strides = [1, 1]} : vector<2x16xf32> to vector<2x1xf32>
    %487 = vector.broadcast %486 : vector<2x1xf32> to vector<2x16xf32>
    %488 = vector.broadcast %22 : vector<1x16xf32> to vector<2x16xf32>
    %489 = arith.mulf %487, %488 : vector<2x16xf32>
    %490 = vector.extract_strided_slice %450 {offsets = [0, 9], sizes = [2, 1], strides = [1, 1]} : vector<2x16xf32> to vector<2x1xf32>
    %491 = vector.broadcast %490 : vector<2x1xf32> to vector<2x16xf32>
    %492 = vector.broadcast %23 : vector<1x16xf32> to vector<2x16xf32>
    %493 = arith.mulf %491, %492 : vector<2x16xf32>
    %494 = vector.extract_strided_slice %450 {offsets = [0, 10], sizes = [2, 1], strides = [1, 1]} : vector<2x16xf32> to vector<2x1xf32>
    %495 = vector.broadcast %494 : vector<2x1xf32> to vector<2x16xf32>
    %496 = vector.broadcast %24 : vector<1x16xf32> to vector<2x16xf32>
    %497 = arith.mulf %495, %496 : vector<2x16xf32>
    %498 = vector.extract_strided_slice %450 {offsets = [0, 11], sizes = [2, 1], strides = [1, 1]} : vector<2x16xf32> to vector<2x1xf32>
    %499 = vector.broadcast %498 : vector<2x1xf32> to vector<2x16xf32>
    %500 = vector.broadcast %25 : vector<1x16xf32> to vector<2x16xf32>
    %501 = arith.mulf %499, %500 : vector<2x16xf32>
    %502 = vector.extract_strided_slice %450 {offsets = [0, 12], sizes = [2, 1], strides = [1, 1]} : vector<2x16xf32> to vector<2x1xf32>
    %503 = vector.broadcast %502 : vector<2x1xf32> to vector<2x16xf32>
    %504 = vector.broadcast %26 : vector<1x16xf32> to vector<2x16xf32>
    %505 = arith.mulf %503, %504 : vector<2x16xf32>
    %506 = vector.extract_strided_slice %450 {offsets = [0, 13], sizes = [2, 1], strides = [1, 1]} : vector<2x16xf32> to vector<2x1xf32>
    %507 = vector.broadcast %506 : vector<2x1xf32> to vector<2x16xf32>
    %508 = vector.broadcast %27 : vector<1x16xf32> to vector<2x16xf32>
    %509 = arith.mulf %507, %508 : vector<2x16xf32>
    %510 = vector.extract_strided_slice %450 {offsets = [0, 14], sizes = [2, 1], strides = [1, 1]} : vector<2x16xf32> to vector<2x1xf32>
    %511 = vector.broadcast %510 : vector<2x1xf32> to vector<2x16xf32>
    %512 = vector.broadcast %28 : vector<1x16xf32> to vector<2x16xf32>
    %513 = arith.mulf %511, %512 : vector<2x16xf32>
    %514 = vector.extract_strided_slice %450 {offsets = [0, 15], sizes = [2, 1], strides = [1, 1]} : vector<2x16xf32> to vector<2x1xf32>
    %515 = vector.broadcast %514 : vector<2x1xf32> to vector<2x16xf32>
    %516 = vector.broadcast %29 : vector<1x16xf32> to vector<2x16xf32>
    %517 = arith.mulf %515, %516 : vector<2x16xf32>
    %518 = arith.addf %453, %457 : vector<2x16xf32>
    %519 = arith.addf %461, %465 : vector<2x16xf32>
    %520 = arith.addf %469, %473 : vector<2x16xf32>
    %521 = arith.addf %477, %481 : vector<2x16xf32>
    %522 = arith.addf %485, %489 : vector<2x16xf32>
    %523 = arith.addf %493, %497 : vector<2x16xf32>
    %524 = arith.addf %501, %505 : vector<2x16xf32>
    %525 = arith.addf %509, %513 : vector<2x16xf32>
    %526 = arith.addf %518, %519 : vector<2x16xf32>
    %527 = arith.addf %520, %521 : vector<2x16xf32>
    %528 = arith.addf %522, %523 : vector<2x16xf32>
    %529 = arith.addf %524, %525 : vector<2x16xf32>
    %530 = arith.addf %526, %527 : vector<2x16xf32>
    %531 = arith.addf %528, %529 : vector<2x16xf32>
    %532 = arith.addf %530, %531 : vector<2x16xf32>
    %533 = arith.addf %532, %517 : vector<2x16xf32>
    %534 = math.tanh %533 : vector<2x16xf32>
    %c6_i32 = arith.constant 6 : i32
    %535 = arith.index_cast %c6_i32 : i32 to index
    %c0_25 = arith.constant 0 : index
    %c0_26 = arith.constant 0 : index
    %536 = vector.load %arg8[%535, %c0_25, %c0_26] : memref<8x2x16xf32, #tpu.memory_space<vmem>>, vector<1x2x16xf32>
    %537 = vector.shape_cast %536 : vector<1x2x16xf32> to vector<2x16xf32>
    %538 = vector.extract_strided_slice %534 {offsets = [0, 0], sizes = [2, 1], strides = [1, 1]} : vector<2x16xf32> to vector<2x1xf32>
    %539 = vector.broadcast %538 : vector<2x1xf32> to vector<2x16xf32>
    %540 = vector.broadcast %14 : vector<1x16xf32> to vector<2x16xf32>
    %541 = arith.mulf %539, %540 : vector<2x16xf32>
    %542 = vector.extract_strided_slice %534 {offsets = [0, 1], sizes = [2, 1], strides = [1, 1]} : vector<2x16xf32> to vector<2x1xf32>
    %543 = vector.broadcast %542 : vector<2x1xf32> to vector<2x16xf32>
    %544 = vector.broadcast %15 : vector<1x16xf32> to vector<2x16xf32>
    %545 = arith.mulf %543, %544 : vector<2x16xf32>
    %546 = vector.extract_strided_slice %534 {offsets = [0, 2], sizes = [2, 1], strides = [1, 1]} : vector<2x16xf32> to vector<2x1xf32>
    %547 = vector.broadcast %546 : vector<2x1xf32> to vector<2x16xf32>
    %548 = vector.broadcast %16 : vector<1x16xf32> to vector<2x16xf32>
    %549 = arith.mulf %547, %548 : vector<2x16xf32>
    %550 = vector.extract_strided_slice %534 {offsets = [0, 3], sizes = [2, 1], strides = [1, 1]} : vector<2x16xf32> to vector<2x1xf32>
    %551 = vector.broadcast %550 : vector<2x1xf32> to vector<2x16xf32>
    %552 = vector.broadcast %17 : vector<1x16xf32> to vector<2x16xf32>
    %553 = arith.mulf %551, %552 : vector<2x16xf32>
    %554 = vector.extract_strided_slice %534 {offsets = [0, 4], sizes = [2, 1], strides = [1, 1]} : vector<2x16xf32> to vector<2x1xf32>
    %555 = vector.broadcast %554 : vector<2x1xf32> to vector<2x16xf32>
    %556 = vector.broadcast %18 : vector<1x16xf32> to vector<2x16xf32>
    %557 = arith.mulf %555, %556 : vector<2x16xf32>
    %558 = vector.extract_strided_slice %534 {offsets = [0, 5], sizes = [2, 1], strides = [1, 1]} : vector<2x16xf32> to vector<2x1xf32>
    %559 = vector.broadcast %558 : vector<2x1xf32> to vector<2x16xf32>
    %560 = vector.broadcast %19 : vector<1x16xf32> to vector<2x16xf32>
    %561 = arith.mulf %559, %560 : vector<2x16xf32>
    %562 = vector.extract_strided_slice %534 {offsets = [0, 6], sizes = [2, 1], strides = [1, 1]} : vector<2x16xf32> to vector<2x1xf32>
    %563 = vector.broadcast %562 : vector<2x1xf32> to vector<2x16xf32>
    %564 = vector.broadcast %20 : vector<1x16xf32> to vector<2x16xf32>
    %565 = arith.mulf %563, %564 : vector<2x16xf32>
    %566 = vector.extract_strided_slice %534 {offsets = [0, 7], sizes = [2, 1], strides = [1, 1]} : vector<2x16xf32> to vector<2x1xf32>
    %567 = vector.broadcast %566 : vector<2x1xf32> to vector<2x16xf32>
    %568 = vector.broadcast %21 : vector<1x16xf32> to vector<2x16xf32>
    %569 = arith.mulf %567, %568 : vector<2x16xf32>
    %570 = vector.extract_strided_slice %534 {offsets = [0, 8], sizes = [2, 1], strides = [1, 1]} : vector<2x16xf32> to vector<2x1xf32>
    %571 = vector.broadcast %570 : vector<2x1xf32> to vector<2x16xf32>
    %572 = vector.broadcast %22 : vector<1x16xf32> to vector<2x16xf32>
    %573 = arith.mulf %571, %572 : vector<2x16xf32>
    %574 = vector.extract_strided_slice %534 {offsets = [0, 9], sizes = [2, 1], strides = [1, 1]} : vector<2x16xf32> to vector<2x1xf32>
    %575 = vector.broadcast %574 : vector<2x1xf32> to vector<2x16xf32>
    %576 = vector.broadcast %23 : vector<1x16xf32> to vector<2x16xf32>
    %577 = arith.mulf %575, %576 : vector<2x16xf32>
    %578 = vector.extract_strided_slice %534 {offsets = [0, 10], sizes = [2, 1], strides = [1, 1]} : vector<2x16xf32> to vector<2x1xf32>
    %579 = vector.broadcast %578 : vector<2x1xf32> to vector<2x16xf32>
    %580 = vector.broadcast %24 : vector<1x16xf32> to vector<2x16xf32>
    %581 = arith.mulf %579, %580 : vector<2x16xf32>
    %582 = vector.extract_strided_slice %534 {offsets = [0, 11], sizes = [2, 1], strides = [1, 1]} : vector<2x16xf32> to vector<2x1xf32>
    %583 = vector.broadcast %582 : vector<2x1xf32> to vector<2x16xf32>
    %584 = vector.broadcast %25 : vector<1x16xf32> to vector<2x16xf32>
    %585 = arith.mulf %583, %584 : vector<2x16xf32>
    %586 = vector.extract_strided_slice %534 {offsets = [0, 12], sizes = [2, 1], strides = [1, 1]} : vector<2x16xf32> to vector<2x1xf32>
    %587 = vector.broadcast %586 : vector<2x1xf32> to vector<2x16xf32>
    %588 = vector.broadcast %26 : vector<1x16xf32> to vector<2x16xf32>
    %589 = arith.mulf %587, %588 : vector<2x16xf32>
    %590 = vector.extract_strided_slice %534 {offsets = [0, 13], sizes = [2, 1], strides = [1, 1]} : vector<2x16xf32> to vector<2x1xf32>
    %591 = vector.broadcast %590 : vector<2x1xf32> to vector<2x16xf32>
    %592 = vector.broadcast %27 : vector<1x16xf32> to vector<2x16xf32>
    %593 = arith.mulf %591, %592 : vector<2x16xf32>
    %594 = vector.extract_strided_slice %534 {offsets = [0, 14], sizes = [2, 1], strides = [1, 1]} : vector<2x16xf32> to vector<2x1xf32>
    %595 = vector.broadcast %594 : vector<2x1xf32> to vector<2x16xf32>
    %596 = vector.broadcast %28 : vector<1x16xf32> to vector<2x16xf32>
    %597 = arith.mulf %595, %596 : vector<2x16xf32>
    %598 = vector.extract_strided_slice %534 {offsets = [0, 15], sizes = [2, 1], strides = [1, 1]} : vector<2x16xf32> to vector<2x1xf32>
    %599 = vector.broadcast %598 : vector<2x1xf32> to vector<2x16xf32>
    %600 = vector.broadcast %29 : vector<1x16xf32> to vector<2x16xf32>
    %601 = arith.mulf %599, %600 : vector<2x16xf32>
    %602 = arith.addf %537, %541 : vector<2x16xf32>
    %603 = arith.addf %545, %549 : vector<2x16xf32>
    %604 = arith.addf %553, %557 : vector<2x16xf32>
    %605 = arith.addf %561, %565 : vector<2x16xf32>
    %606 = arith.addf %569, %573 : vector<2x16xf32>
    %607 = arith.addf %577, %581 : vector<2x16xf32>
    %608 = arith.addf %585, %589 : vector<2x16xf32>
    %609 = arith.addf %593, %597 : vector<2x16xf32>
    %610 = arith.addf %602, %603 : vector<2x16xf32>
    %611 = arith.addf %604, %605 : vector<2x16xf32>
    %612 = arith.addf %606, %607 : vector<2x16xf32>
    %613 = arith.addf %608, %609 : vector<2x16xf32>
    %614 = arith.addf %610, %611 : vector<2x16xf32>
    %615 = arith.addf %612, %613 : vector<2x16xf32>
    %616 = arith.addf %614, %615 : vector<2x16xf32>
    %617 = arith.addf %616, %601 : vector<2x16xf32>
    %618 = math.tanh %617 : vector<2x16xf32>
    %c7_i32 = arith.constant 7 : i32
    %619 = arith.index_cast %c7_i32 : i32 to index
    %c0_27 = arith.constant 0 : index
    %c0_28 = arith.constant 0 : index
    %620 = vector.load %arg8[%619, %c0_27, %c0_28] : memref<8x2x16xf32, #tpu.memory_space<vmem>>, vector<1x2x16xf32>
    %621 = vector.shape_cast %620 : vector<1x2x16xf32> to vector<2x16xf32>
    %622 = vector.extract_strided_slice %618 {offsets = [0, 0], sizes = [2, 1], strides = [1, 1]} : vector<2x16xf32> to vector<2x1xf32>
    %623 = vector.broadcast %622 : vector<2x1xf32> to vector<2x16xf32>
    %624 = vector.broadcast %14 : vector<1x16xf32> to vector<2x16xf32>
    %625 = arith.mulf %623, %624 : vector<2x16xf32>
    %626 = vector.extract_strided_slice %618 {offsets = [0, 1], sizes = [2, 1], strides = [1, 1]} : vector<2x16xf32> to vector<2x1xf32>
    %627 = vector.broadcast %626 : vector<2x1xf32> to vector<2x16xf32>
    %628 = vector.broadcast %15 : vector<1x16xf32> to vector<2x16xf32>
    %629 = arith.mulf %627, %628 : vector<2x16xf32>
    %630 = vector.extract_strided_slice %618 {offsets = [0, 2], sizes = [2, 1], strides = [1, 1]} : vector<2x16xf32> to vector<2x1xf32>
    %631 = vector.broadcast %630 : vector<2x1xf32> to vector<2x16xf32>
    %632 = vector.broadcast %16 : vector<1x16xf32> to vector<2x16xf32>
    %633 = arith.mulf %631, %632 : vector<2x16xf32>
    %634 = vector.extract_strided_slice %618 {offsets = [0, 3], sizes = [2, 1], strides = [1, 1]} : vector<2x16xf32> to vector<2x1xf32>
    %635 = vector.broadcast %634 : vector<2x1xf32> to vector<2x16xf32>
    %636 = vector.broadcast %17 : vector<1x16xf32> to vector<2x16xf32>
    %637 = arith.mulf %635, %636 : vector<2x16xf32>
    %638 = vector.extract_strided_slice %618 {offsets = [0, 4], sizes = [2, 1], strides = [1, 1]} : vector<2x16xf32> to vector<2x1xf32>
    %639 = vector.broadcast %638 : vector<2x1xf32> to vector<2x16xf32>
    %640 = vector.broadcast %18 : vector<1x16xf32> to vector<2x16xf32>
    %641 = arith.mulf %639, %640 : vector<2x16xf32>
    %642 = vector.extract_strided_slice %618 {offsets = [0, 5], sizes = [2, 1], strides = [1, 1]} : vector<2x16xf32> to vector<2x1xf32>
    %643 = vector.broadcast %642 : vector<2x1xf32> to vector<2x16xf32>
    %644 = vector.broadcast %19 : vector<1x16xf32> to vector<2x16xf32>
    %645 = arith.mulf %643, %644 : vector<2x16xf32>
    %646 = vector.extract_strided_slice %618 {offsets = [0, 6], sizes = [2, 1], strides = [1, 1]} : vector<2x16xf32> to vector<2x1xf32>
    %647 = vector.broadcast %646 : vector<2x1xf32> to vector<2x16xf32>
    %648 = vector.broadcast %20 : vector<1x16xf32> to vector<2x16xf32>
    %649 = arith.mulf %647, %648 : vector<2x16xf32>
    %650 = vector.extract_strided_slice %618 {offsets = [0, 7], sizes = [2, 1], strides = [1, 1]} : vector<2x16xf32> to vector<2x1xf32>
    %651 = vector.broadcast %650 : vector<2x1xf32> to vector<2x16xf32>
    %652 = vector.broadcast %21 : vector<1x16xf32> to vector<2x16xf32>
    %653 = arith.mulf %651, %652 : vector<2x16xf32>
    %654 = vector.extract_strided_slice %618 {offsets = [0, 8], sizes = [2, 1], strides = [1, 1]} : vector<2x16xf32> to vector<2x1xf32>
    %655 = vector.broadcast %654 : vector<2x1xf32> to vector<2x16xf32>
    %656 = vector.broadcast %22 : vector<1x16xf32> to vector<2x16xf32>
    %657 = arith.mulf %655, %656 : vector<2x16xf32>
    %658 = vector.extract_strided_slice %618 {offsets = [0, 9], sizes = [2, 1], strides = [1, 1]} : vector<2x16xf32> to vector<2x1xf32>
    %659 = vector.broadcast %658 : vector<2x1xf32> to vector<2x16xf32>
    %660 = vector.broadcast %23 : vector<1x16xf32> to vector<2x16xf32>
    %661 = arith.mulf %659, %660 : vector<2x16xf32>
    %662 = vector.extract_strided_slice %618 {offsets = [0, 10], sizes = [2, 1], strides = [1, 1]} : vector<2x16xf32> to vector<2x1xf32>
    %663 = vector.broadcast %662 : vector<2x1xf32> to vector<2x16xf32>
    %664 = vector.broadcast %24 : vector<1x16xf32> to vector<2x16xf32>
    %665 = arith.mulf %663, %664 : vector<2x16xf32>
    %666 = vector.extract_strided_slice %618 {offsets = [0, 11], sizes = [2, 1], strides = [1, 1]} : vector<2x16xf32> to vector<2x1xf32>
    %667 = vector.broadcast %666 : vector<2x1xf32> to vector<2x16xf32>
    %668 = vector.broadcast %25 : vector<1x16xf32> to vector<2x16xf32>
    %669 = arith.mulf %667, %668 : vector<2x16xf32>
    %670 = vector.extract_strided_slice %618 {offsets = [0, 12], sizes = [2, 1], strides = [1, 1]} : vector<2x16xf32> to vector<2x1xf32>
    %671 = vector.broadcast %670 : vector<2x1xf32> to vector<2x16xf32>
    %672 = vector.broadcast %26 : vector<1x16xf32> to vector<2x16xf32>
    %673 = arith.mulf %671, %672 : vector<2x16xf32>
    %674 = vector.extract_strided_slice %618 {offsets = [0, 13], sizes = [2, 1], strides = [1, 1]} : vector<2x16xf32> to vector<2x1xf32>
    %675 = vector.broadcast %674 : vector<2x1xf32> to vector<2x16xf32>
    %676 = vector.broadcast %27 : vector<1x16xf32> to vector<2x16xf32>
    %677 = arith.mulf %675, %676 : vector<2x16xf32>
    %678 = vector.extract_strided_slice %618 {offsets = [0, 14], sizes = [2, 1], strides = [1, 1]} : vector<2x16xf32> to vector<2x1xf32>
    %679 = vector.broadcast %678 : vector<2x1xf32> to vector<2x16xf32>
    %680 = vector.broadcast %28 : vector<1x16xf32> to vector<2x16xf32>
    %681 = arith.mulf %679, %680 : vector<2x16xf32>
    %682 = vector.extract_strided_slice %618 {offsets = [0, 15], sizes = [2, 1], strides = [1, 1]} : vector<2x16xf32> to vector<2x1xf32>
    %683 = vector.broadcast %682 : vector<2x1xf32> to vector<2x16xf32>
    %684 = vector.broadcast %29 : vector<1x16xf32> to vector<2x16xf32>
    %685 = arith.mulf %683, %684 : vector<2x16xf32>
    %686 = arith.addf %621, %625 : vector<2x16xf32>
    %687 = arith.addf %629, %633 : vector<2x16xf32>
    %688 = arith.addf %637, %641 : vector<2x16xf32>
    %689 = arith.addf %645, %649 : vector<2x16xf32>
    %690 = arith.addf %653, %657 : vector<2x16xf32>
    %691 = arith.addf %661, %665 : vector<2x16xf32>
    %692 = arith.addf %669, %673 : vector<2x16xf32>
    %693 = arith.addf %677, %681 : vector<2x16xf32>
    %694 = arith.addf %686, %687 : vector<2x16xf32>
    %695 = arith.addf %688, %689 : vector<2x16xf32>
    %696 = arith.addf %690, %691 : vector<2x16xf32>
    %697 = arith.addf %692, %693 : vector<2x16xf32>
    %698 = arith.addf %694, %695 : vector<2x16xf32>
    %699 = arith.addf %696, %697 : vector<2x16xf32>
    %700 = arith.addf %698, %699 : vector<2x16xf32>
    %701 = arith.addf %700, %685 : vector<2x16xf32>
    %702 = math.tanh %701 : vector<2x16xf32>
    %c8_i32 = arith.constant 8 : i32
    %c0_29 = arith.constant 0 : index
    %c0_30 = arith.constant 0 : index
    %703 = vector.load %arg5[%c0_29, %c0_30] : memref<16x1xf32, #tpu.memory_space<vmem>>, vector<16x1xf32>
    %cst_31 = arith.constant dense<0.000000e+00> : vector<2x1xf32>
    %704 = tpu.matmul %702, %703, %cst_31 {dimension_numbers = #tpu.dot_dimension_numbers<[1], [0], [0], [1], [0, 0, 1, 1], [], []>} : vector<2x16xf32>, vector<16x1xf32>, vector<2x1xf32> -> vector<2x1xf32>
    %c0_32 = arith.constant 0 : index
    %c0_33 = arith.constant 0 : index
    %705 = vector.load %arg6[%c0_32, %c0_33] : memref<1x1xf32, #tpu.memory_space<vmem>>, vector<1x1xf32>
    %706 = vector.broadcast %705 : vector<1x1xf32> to vector<2x1xf32>
    %707 = arith.addf %704, %706 : vector<2x1xf32>
    %c0_34 = arith.constant 0 : index
    %c0_35 = arith.constant 0 : index
    %708 = vector.load %arg7[%c0_34, %c0_35] : memref<2x1xf32, #tpu.memory_space<vmem>>, vector<2x1xf32>
    tpu.vector_store %arg7[%c0_34, %c0_35], %707 {strides = array<i32>} : memref<2x1xf32, #tpu.memory_space<vmem>>, vector<2x1xf32>,
    return
  }
}

</mosaic_0001>

<llo_original>
// kernel: simple_rnn_forward.1
$region0: #{simple_rnn_forward.1}
  #allocation0 [shape = 'u32[]', space=smem, size = 0x4, offset = 0x4, fixed_abs, tag = 'smem constant byte address 0x4 - core index']
  #allocation1 [shape = 'u32[72,128]{1,0:T(1,128)}', space=vmem, size = 0x9000, scoped, tag = 'internal scratch']
  #allocation2 [shape = 'f32[8,2,16]{2,1,0:T(2,128)}', space=vmem, size = 0x2000, scoped, tag = 'scratch operand']
  #allocation3 [shape = 'f32[1,1]{1,0:T(1,128)S(1)}', space=vmem, size = 0x200, scoped, tag = 'scoped memory for simple_rnn_forward.1']
  %s0 = inlined_call_operand.vmem [shape: f32[8,2,1], index: 0, kind: input, shape index: {}]
  %s1 = inlined_call_operand.vmem [shape: f32[1,16], index: 1, kind: input, shape index: {}]
  %s2 = inlined_call_operand.vmem [shape: f32[16,16], index: 2, kind: input, shape index: {}]
  %s3 = inlined_call_operand.vmem [shape: f32[1,16], index: 3, kind: input, shape index: {}]
  %s4 = inlined_call_operand.vmem [shape: f32[1,16], index: 4, kind: input, shape index: {}]
  %s5 = inlined_call_operand.vmem [shape: f32[16,1], index: 5, kind: input, shape index: {}]
  %s6 = inlined_call_operand.<no memory space> [shape: f32[1,1], index: 6, kind: input, shape index: {}]
  %s7 = inlined_call_operand.vmem [shape: f32[2,1], index: 7, kind: output, shape index: {}]
  %s8 = sld [smem:[#allocation0]]
  $region38: #{simple_rnn_forward.1} parent=0
    _
  %s10 = ssub.s32 1, %s8
  %s11 = scalar_select 0, %s10, %s8
  %v12 = vstv %s6
  %13 = vst [vmem:[#allocation3] sm:$0x1] %v12
  // Predicated region
  $region2: #{simple_rnn_forward.1} parent=0 // pred_check
    _
  $region3: #{simple_rnn_forward.1} parent=0 // pred_check_branch
    %15 = sbr.rel (0) target = $region5
  $region4: #{simple_rnn_forward.1} parent=0 // pred_region
    _
  $region5: #{simple_rnn_forward.1} parent=0 // pred_fallthru
    _
  // Predicated region
  $region6: #{simple_rnn_forward.1} parent=0 // pred_check
    _
  $region7: #{simple_rnn_forward.1} parent=0 // pred_check_branch
    %17 = sbr.rel (0) target = $region9
  $region8: #{simple_rnn_forward.1} parent=0 // pred_region
    _
  $region9: #{simple_rnn_forward.1} parent=0 // pred_fallthru
    _
  // Predicated region
  $region10: #{simple_rnn_forward.1} parent=0 // pred_check
    _
  $region11: #{simple_rnn_forward.1} parent=0 // pred_check_branch
    %19 = sbr.rel (0) target = $region13
  $region12: #{simple_rnn_forward.1} parent=0 // pred_region
    _
  $region13: #{simple_rnn_forward.1} parent=0 // pred_fallthru
    _
  // Predicated region
  $region14: #{simple_rnn_forward.1} parent=0 // pred_check
    _
  $region15: #{simple_rnn_forward.1} parent=0 // pred_check_branch
    %21 = sbr.rel (0) target = $region17
  $region16: #{simple_rnn_forward.1} parent=0 // pred_region
    _
  $region17: #{simple_rnn_forward.1} parent=0 // pred_fallthru
    _
  // Predicated region
  $region18: #{simple_rnn_forward.1} parent=0 // pred_check
    _
  $region19: #{simple_rnn_forward.1} parent=0 // pred_check_branch
    %23 = sbr.rel (0) target = $region21
  $region20: #{simple_rnn_forward.1} parent=0 // pred_region
    _
  $region21: #{simple_rnn_forward.1} parent=0 // pred_fallthru
    _
  // Predicated region
  $region22: #{simple_rnn_forward.1} parent=0 // pred_check
    _
  $region23: #{simple_rnn_forward.1} parent=0 // pred_check_branch
    %25 = sbr.rel (0) target = $region25
  $region24: #{simple_rnn_forward.1} parent=0 // pred_region
    _
  $region25: #{simple_rnn_forward.1} parent=0 // pred_fallthru
    _
  // Predicated region
  $region26: #{simple_rnn_forward.1} parent=0 // pred_check
    _
  $region27: #{simple_rnn_forward.1} parent=0 // pred_check_branch
    %27 = sbr.rel (0) target = $region29
  $region28: #{simple_rnn_forward.1} parent=0 // pred_region
    _
  $region29: #{simple_rnn_forward.1} parent=0 // pred_fallthru
    _
  %v28 = vld [vmem:[%s3] sm:$0x1]
  %v29 = vld [vmem:[%s4] sm:$0x1]
  %v30 = vadd.f32 %v28, %v29
  %v31 = vld [vmem:[%s0] sm:$0x3]
  %v32 = vld [vmem:[%s0 + $0x2] sm:$0x3]
  %v33 = vld [vmem:[%s0 + $0x4] sm:$0x3]
  %v34 = vld [vmem:[%s0 + $0x6] sm:$0x3]
  %v35 = vld [vmem:[%s0 + $0x8] sm:$0x3]
  %v36 = vld [vmem:[%s0 + $0xa] sm:$0x3]
  %v37 = vld [vmem:[%s0 + $0xc] sm:$0x3]
  %v38 = vld [vmem:[%s0 + $0xe] sm:$0x3]
  %v39 = vld [vmem:[%s1] sm:$0x1]
  %41 = vset.pattern.permute.xlu0 0
  %42 = vperm.xlu0 %41, %v31
  %v43 = vpop.permute.xlu0 %42
  %46 = vset.pattern.permute.xlu0 0
  %47 = vperm.xlu0 %46, %v32
  %v48 = vpop.permute.xlu0 %47
  %51 = vset.pattern.permute.xlu0 0
  %52 = vperm.xlu0 %51, %v33
  %v53 = vpop.permute.xlu0 %52
  %56 = vset.pattern.permute.xlu0 0
  %57 = vperm.xlu0 %56, %v34
  %v58 = vpop.permute.xlu0 %57
  %61 = vset.pattern.permute.xlu0 0
  %62 = vperm.xlu0 %61, %v35
  %v63 = vpop.permute.xlu0 %62
  %66 = vset.pattern.permute.xlu0 0
  %67 = vperm.xlu0 %66, %v36
  %v68 = vpop.permute.xlu0 %67
  %71 = vset.pattern.permute.xlu0 0
  %72 = vperm.xlu0 %71, %v37
  %v73 = vpop.permute.xlu0 %72
  %76 = vset.pattern.permute.xlu0 0
  %77 = vperm.xlu0 %76, %v38
  %v78 = vpop.permute.xlu0 %77
  %v81 = vperm.slane %v39, 0
  %v83 = vmul.f32 %v43, %v81
  %v84 = vmul.f32 %v48, %v81
  %v85 = vmul.f32 %v53, %v81
  %v86 = vmul.f32 %v58, %v81
  %v87 = vmul.f32 %v63, %v81
  %v88 = vmul.f32 %v68, %v81
  %v89 = vmul.f32 %v73, %v81
  %v90 = vmul.f32 %v78, %v81
  %v92 = vperm.slane %v30, 0
  %v94 = vadd.f32 %v83, %v92
  %v95 = vadd.f32 %v84, %v92
  %v96 = vadd.f32 %v85, %v92
  %v97 = vadd.f32 %v86, %v92
  %v98 = vadd.f32 %v87, %v92
  %v99 = vadd.f32 %v88, %v92
  %v100 = vadd.f32 %v89, %v92
  %v101 = vadd.f32 %v90, %v92
  %vm102 = vcmask 123904
  %103 = vst.msk [vmem:[#allocation2] sm:$0x3] %vm102, %v94
  %104 = vst.msk [vmem:[#allocation2 + $0x2] sm:$0x3] %vm102, %v95
  %105 = vst.msk [vmem:[#allocation2 + $0x4] sm:$0x3] %vm102, %v96
  %106 = vst.msk [vmem:[#allocation2 + $0x6] sm:$0x3] %vm102, %v97
  %107 = vst.msk [vmem:[#allocation2 + $0x8] sm:$0x3] %vm102, %v98
  %108 = vst.msk [vmem:[#allocation2 + $0xa] sm:$0x3] %vm102, %v99
  %109 = vst.msk [vmem:[#allocation2 + $0xc] sm:$0x3] %vm102, %v100
  %110 = vst.msk [vmem:[#allocation2 + $0xe] sm:$0x3] %vm102, %v101
  %v111 = vld [vmem:[%s2] sm:$0xff]
  %v112 = vld [vmem:[%s2 + $0x8] sm:$0xff]
  %v113 = vld [vmem:[#allocation2] sm:$0x3]
  %v114 = vperm.slane %v111, 0
  %v115 = vmul.f32 %v114, 0.0
  %v116 = vperm.slane %v111, 1
  %v117 = vmul.f32 %v116, 0.0
  %v118 = vperm.slane %v111, 2
  %v119 = vmul.f32 %v118, 0.0
  %v120 = vperm.slane %v111, 3
  %v121 = vmul.f32 %v120, 0.0
  %v122 = vperm.slane %v111, 4
  %v123 = vmul.f32 %v122, 0.0
  %v124 = vperm.slane %v111, 5
  %v125 = vmul.f32 %v124, 0.0
  %v126 = vperm.slane %v111, 6
  %v127 = vmul.f32 %v126, 0.0
  %v128 = vperm.slane %v111, 7
  %v129 = vmul.f32 %v128, 0.0
  %v130 = vperm.slane %v112, 0
  %v131 = vmul.f32 %v130, 0.0
  %v132 = vperm.slane %v112, 1
  %v133 = vmul.f32 %v132, 0.0
  %v134 = vperm.slane %v112, 2
  %v135 = vmul.f32 %v134, 0.0
  %v136 = vperm.slane %v112, 3
  %v137 = vmul.f32 %v136, 0.0
  %v138 = vperm.slane %v112, 4
  %v139 = vmul.f32 %v138, 0.0
  %v140 = vperm.slane %v112, 5
  %v141 = vmul.f32 %v140, 0.0
  %v142 = vperm.slane %v112, 6
  %v143 = vmul.f32 %v142, 0.0
  %v144 = vperm.slane %v112, 7
  %v145 = vmul.f32 %v144, 0.0
  %v146 = vadd.f32 %v113, %v115
  %v147 = vadd.f32 %v117, %v119
  %v148 = vadd.f32 %v121, %v123
  %v149 = vadd.f32 %v125, %v127
  %v150 = vadd.f32 %v129, %v131
  %v151 = vadd.f32 %v133, %v135
  %v152 = vadd.f32 %v137, %v139
  %v153 = vadd.f32 %v141, %v143
  %v154 = vadd.f32 %v146, %v147
  %v155 = vadd.f32 %v148, %v149
  %v156 = vadd.f32 %v150, %v151
  %v157 = vadd.f32 %v152, %v153
  %v158 = vadd.f32 %v154, %v155
  %v159 = vadd.f32 %v156, %v157
  %v160 = vadd.f32 %v158, %v159
  %v161 = vadd.f32 %v160, %v145
  %v162 = vtanh.pop %v161
  %s163 = scalar_lea.vmem [#allocation2], 2
  %v164 = vld [vmem:[%s163] sm:$0x3]
  %166 = vset.pattern.permute.xlu0 0
  %167 = vperm.xlu0 %166, %v162
  %v168 = vpop.permute.xlu0 %167
  %v170 = vmul.f32 %v168, %v114
  %171 = vset.pattern.permute.xlu0 1
  %172 = vperm.xlu0 %171, %v162
  %v173 = vpop.permute.xlu0 %172
  %v175 = vmul.f32 %v173, %v116
  %176 = vset.pattern.permute.xlu0 2
  %177 = vperm.xlu0 %176, %v162
  %v178 = vpop.permute.xlu0 %177
  %v180 = vmul.f32 %v178, %v118
  %181 = vset.pattern.permute.xlu0 3
  %182 = vperm.xlu0 %181, %v162
  %v183 = vpop.permute.xlu0 %182
  %v185 = vmul.f32 %v183, %v120
  %186 = vset.pattern.permute.xlu0 4
  %187 = vperm.xlu0 %186, %v162
  %v188 = vpop.permute.xlu0 %187
  %v190 = vmul.f32 %v188, %v122
  %191 = vset.pattern.permute.xlu0 5
  %192 = vperm.xlu0 %191, %v162
  %v193 = vpop.permute.xlu0 %192
  %v195 = vmul.f32 %v193, %v124
  %196 = vset.pattern.permute.xlu0 6
  %197 = vperm.xlu0 %196, %v162
  %v198 = vpop.permute.xlu0 %197
  %v200 = vmul.f32 %v198, %v126
  %201 = vset.pattern.permute.xlu0 7
  %202 = vperm.xlu0 %201, %v162
  %v203 = vpop.permute.xlu0 %202
  %v205 = vmul.f32 %v203, %v128
  %206 = vset.pattern.permute.xlu0 8
  %207 = vperm.xlu0 %206, %v162
  %v208 = vpop.permute.xlu0 %207
  %v210 = vmul.f32 %v208, %v130
  %211 = vset.pattern.permute.xlu0 9
  %212 = vperm.xlu0 %211, %v162
  %v213 = vpop.permute.xlu0 %212
  %v215 = vmul.f32 %v213, %v132
  %216 = vset.pattern.permute.xlu0 10
  %217 = vperm.xlu0 %216, %v162
  %v218 = vpop.permute.xlu0 %217
  %v220 = vmul.f32 %v218, %v134
  %221 = vset.pattern.permute.xlu0 11
  %222 = vperm.xlu0 %221, %v162
  %v223 = vpop.permute.xlu0 %222
  %v225 = vmul.f32 %v223, %v136
  %226 = vset.pattern.permute.xlu0 12
  %227 = vperm.xlu0 %226, %v162
  %v228 = vpop.permute.xlu0 %227
  %v230 = vmul.f32 %v228, %v138
  %231 = vset.pattern.permute.xlu0 13
  %232 = vperm.xlu0 %231, %v162
  %v233 = vpop.permute.xlu0 %232
  %v235 = vmul.f32 %v233, %v140
  %236 = vset.pattern.permute.xlu0 14
  %237 = vperm.xlu0 %236, %v162
  %v238 = vpop.permute.xlu0 %237
  %v240 = vmul.f32 %v238, %v142
  %241 = vset.pattern.permute.xlu0 15
  %242 = vperm.xlu0 %241, %v162
  %v243 = vpop.permute.xlu0 %242
  %v245 = vmul.f32 %v243, %v144
  %v246 = vadd.f32 %v164, %v170
  %v247 = vadd.f32 %v175, %v180
  %v248 = vadd.f32 %v185, %v190
  %v249 = vadd.f32 %v195, %v200
  %v250 = vadd.f32 %v205, %v210
  %v251 = vadd.f32 %v215, %v220
  %v252 = vadd.f32 %v225, %v230
  %v253 = vadd.f32 %v235, %v240
  %v254 = vadd.f32 %v246, %v247
  %v255 = vadd.f32 %v248, %v249
  %v256 = vadd.f32 %v250, %v251
  %v257 = vadd.f32 %v252, %v253
  %v258 = vadd.f32 %v254, %v255
  %v259 = vadd.f32 %v256, %v257
  %v260 = vadd.f32 %v258, %v259
  %v261 = vadd.f32 %v260, %v245
  %v262 = vtanh.pop %v261
  %s263 = scalar_lea.vmem [#allocation2], 4
  %v264 = vld [vmem:[%s263] sm:$0x3]
  %266 = vset.pattern.permute.xlu0 0
  %267 = vperm.xlu0 %266, %v262
  %v268 = vpop.permute.xlu0 %267
  %v270 = vmul.f32 %v268, %v114
  %271 = vset.pattern.permute.xlu0 1
  %272 = vperm.xlu0 %271, %v262
  %v273 = vpop.permute.xlu0 %272
  %v275 = vmul.f32 %v273, %v116
  %276 = vset.pattern.permute.xlu0 2
  %277 = vperm.xlu0 %276, %v262
  %v278 = vpop.permute.xlu0 %277
  %v280 = vmul.f32 %v278, %v118
  %281 = vset.pattern.permute.xlu0 3
  %282 = vperm.xlu0 %281, %v262
  %v283 = vpop.permute.xlu0 %282
  %v285 = vmul.f32 %v283, %v120
  %286 = vset.pattern.permute.xlu0 4
  %287 = vperm.xlu0 %286, %v262
  %v288 = vpop.permute.xlu0 %287
  %v290 = vmul.f32 %v288, %v122
  %291 = vset.pattern.permute.xlu0 5
  %292 = vperm.xlu0 %291, %v262
  %v293 = vpop.permute.xlu0 %292
  %v295 = vmul.f32 %v293, %v124
  %296 = vset.pattern.permute.xlu0 6
  %297 = vperm.xlu0 %296, %v262
  %v298 = vpop.permute.xlu0 %297
  %v300 = vmul.f32 %v298, %v126
  %301 = vset.pattern.permute.xlu0 7
  %302 = vperm.xlu0 %301, %v262
  %v303 = vpop.permute.xlu0 %302
  %v305 = vmul.f32 %v303, %v128
  %306 = vset.pattern.permute.xlu0 8
  %307 = vperm.xlu0 %306, %v262
  %v308 = vpop.permute.xlu0 %307
  %v310 = vmul.f32 %v308, %v130
  %311 = vset.pattern.permute.xlu0 9
  %312 = vperm.xlu0 %311, %v262
  %v313 = vpop.permute.xlu0 %312
  %v315 = vmul.f32 %v313, %v132
  %316 = vset.pattern.permute.xlu0 10
  %317 = vperm.xlu0 %316, %v262
  %v318 = vpop.permute.xlu0 %317
  %v320 = vmul.f32 %v318, %v134
  %321 = vset.pattern.permute.xlu0 11
  %322 = vperm.xlu0 %321, %v262
  %v323 = vpop.permute.xlu0 %322
  %v325 = vmul.f32 %v323, %v136
  %326 = vset.pattern.permute.xlu0 12
  %327 = vperm.xlu0 %326, %v262
  %v328 = vpop.permute.xlu0 %327
  %v330 = vmul.f32 %v328, %v138
  %331 = vset.pattern.permute.xlu0 13
  %332 = vperm.xlu0 %331, %v262
  %v333 = vpop.permute.xlu0 %332
  %v335 = vmul.f32 %v333, %v140
  %336 = vset.pattern.permute.xlu0 14
  %337 = vperm.xlu0 %336, %v262
  %v338 = vpop.permute.xlu0 %337
  %v340 = vmul.f32 %v338, %v142
  %341 = vset.pattern.permute.xlu0 15
  %342 = vperm.xlu0 %341, %v262
  %v343 = vpop.permute.xlu0 %342
  %v345 = vmul.f32 %v343, %v144
  %v346 = vadd.f32 %v264, %v270
  %v347 = vadd.f32 %v275, %v280
  %v348 = vadd.f32 %v285, %v290
  %v349 = vadd.f32 %v295, %v300
  %v350 = vadd.f32 %v305, %v310
  %v351 = vadd.f32 %v315, %v320
  %v352 = vadd.f32 %v325, %v330
  %v353 = vadd.f32 %v335, %v340
  %v354 = vadd.f32 %v346, %v347
  %v355 = vadd.f32 %v348, %v349
  %v356 = vadd.f32 %v350, %v351
  %v357 = vadd.f32 %v352, %v353
  %v358 = vadd.f32 %v354, %v355
  %v359 = vadd.f32 %v356, %v357
  %v360 = vadd.f32 %v358, %v359
  %v361 = vadd.f32 %v360, %v345
  %v362 = vtanh.pop %v361
  %s363 = scalar_lea.vmem [#allocation2], 6
  %v364 = vld [vmem:[%s363] sm:$0x3]
  %366 = vset.pattern.permute.xlu0 0
  %367 = vperm.xlu0 %366, %v362
  %v368 = vpop.permute.xlu0 %367
  %v370 = vmul.f32 %v368, %v114
  %371 = vset.pattern.permute.xlu0 1
  %372 = vperm.xlu0 %371, %v362
  %v373 = vpop.permute.xlu0 %372
  %v375 = vmul.f32 %v373, %v116
  %376 = vset.pattern.permute.xlu0 2
  %377 = vperm.xlu0 %376, %v362
  %v378 = vpop.permute.xlu0 %377
  %v380 = vmul.f32 %v378, %v118
  %381 = vset.pattern.permute.xlu0 3
  %382 = vperm.xlu0 %381, %v362
  %v383 = vpop.permute.xlu0 %382
  %v385 = vmul.f32 %v383, %v120
  %386 = vset.pattern.permute.xlu0 4
  %387 = vperm.xlu0 %386, %v362
  %v388 = vpop.permute.xlu0 %387
  %v390 = vmul.f32 %v388, %v122
  %391 = vset.pattern.permute.xlu0 5
  %392 = vperm.xlu0 %391, %v362
  %v393 = vpop.permute.xlu0 %392
  %v395 = vmul.f32 %v393, %v124
  %396 = vset.pattern.permute.xlu0 6
  %397 = vperm.xlu0 %396, %v362
  %v398 = vpop.permute.xlu0 %397
  %v400 = vmul.f32 %v398, %v126
  %401 = vset.pattern.permute.xlu0 7
  %402 = vperm.xlu0 %401, %v362
  %v403 = vpop.permute.xlu0 %402
  %v405 = vmul.f32 %v403, %v128
  %406 = vset.pattern.permute.xlu0 8
  %407 = vperm.xlu0 %406, %v362
  %v408 = vpop.permute.xlu0 %407
  %v410 = vmul.f32 %v408, %v130
  %411 = vset.pattern.permute.xlu0 9
  %412 = vperm.xlu0 %411, %v362
  %v413 = vpop.permute.xlu0 %412
  %v415 = vmul.f32 %v413, %v132
  %416 = vset.pattern.permute.xlu0 10
  %417 = vperm.xlu0 %416, %v362
  %v418 = vpop.permute.xlu0 %417
  %v420 = vmul.f32 %v418, %v134
  %421 = vset.pattern.permute.xlu0 11
  %422 = vperm.xlu0 %421, %v362
  %v423 = vpop.permute.xlu0 %422
  %v425 = vmul.f32 %v423, %v136
  %426 = vset.pattern.permute.xlu0 12
  %427 = vperm.xlu0 %426, %v362
  %v428 = vpop.permute.xlu0 %427
  %v430 = vmul.f32 %v428, %v138
  %431 = vset.pattern.permute.xlu0 13
  %432 = vperm.xlu0 %431, %v362
  %v433 = vpop.permute.xlu0 %432
  %v435 = vmul.f32 %v433, %v140
  %436 = vset.pattern.permute.xlu0 14
  %437 = vperm.xlu0 %436, %v362
  %v438 = vpop.permute.xlu0 %437
  %v440 = vmul.f32 %v438, %v142
  %441 = vset.pattern.permute.xlu0 15
  %442 = vperm.xlu0 %441, %v362
  %v443 = vpop.permute.xlu0 %442
  %v445 = vmul.f32 %v443, %v144
  %v446 = vadd.f32 %v364, %v370
  %v447 = vadd.f32 %v375, %v380
  %v448 = vadd.f32 %v385, %v390
  %v449 = vadd.f32 %v395, %v400
  %v450 = vadd.f32 %v405, %v410
  %v451 = vadd.f32 %v415, %v420
  %v452 = vadd.f32 %v425, %v430
  %v453 = vadd.f32 %v435, %v440
  %v454 = vadd.f32 %v446, %v447
  %v455 = vadd.f32 %v448, %v449
  %v456 = vadd.f32 %v450, %v451
  %v457 = vadd.f32 %v452, %v453
  %v458 = vadd.f32 %v454, %v455
  %v459 = vadd.f32 %v456, %v457
  %v460 = vadd.f32 %v458, %v459
  %v461 = vadd.f32 %v460, %v445
  %v462 = vtanh.pop %v461
  %s463 = scalar_lea.vmem [#allocation2], 8
  %v464 = vld [vmem:[%s463] sm:$0x3]
  %466 = vset.pattern.permute.xlu0 0
  %467 = vperm.xlu0 %466, %v462
  %v468 = vpop.permute.xlu0 %467
  %v470 = vmul.f32 %v468, %v114
  %471 = vset.pattern.permute.xlu0 1
  %472 = vperm.xlu0 %471, %v462
  %v473 = vpop.permute.xlu0 %472
  %v475 = vmul.f32 %v473, %v116
  %476 = vset.pattern.permute.xlu0 2
  %477 = vperm.xlu0 %476, %v462
  %v478 = vpop.permute.xlu0 %477
  %v480 = vmul.f32 %v478, %v118
  %481 = vset.pattern.permute.xlu0 3
  %482 = vperm.xlu0 %481, %v462
  %v483 = vpop.permute.xlu0 %482
  %v485 = vmul.f32 %v483, %v120
  %486 = vset.pattern.permute.xlu0 4
  %487 = vperm.xlu0 %486, %v462
  %v488 = vpop.permute.xlu0 %487
  %v490 = vmul.f32 %v488, %v122
  %491 = vset.pattern.permute.xlu0 5
  %492 = vperm.xlu0 %491, %v462
  %v493 = vpop.permute.xlu0 %492
  %v495 = vmul.f32 %v493, %v124
  %496 = vset.pattern.permute.xlu0 6
  %497 = vperm.xlu0 %496, %v462
  %v498 = vpop.permute.xlu0 %497
  %v500 = vmul.f32 %v498, %v126
  %501 = vset.pattern.permute.xlu0 7
  %502 = vperm.xlu0 %501, %v462
  %v503 = vpop.permute.xlu0 %502
  %v505 = vmul.f32 %v503, %v128
  %506 = vset.pattern.permute.xlu0 8
  %507 = vperm.xlu0 %506, %v462
  %v508 = vpop.permute.xlu0 %507
  %v510 = vmul.f32 %v508, %v130
  %511 = vset.pattern.permute.xlu0 9
  %512 = vperm.xlu0 %511, %v462
  %v513 = vpop.permute.xlu0 %512
  %v515 = vmul.f32 %v513, %v132
  %516 = vset.pattern.permute.xlu0 10
  %517 = vperm.xlu0 %516, %v462
  %v518 = vpop.permute.xlu0 %517
  %v520 = vmul.f32 %v518, %v134
  %521 = vset.pattern.permute.xlu0 11
  %522 = vperm.xlu0 %521, %v462
  %v523 = vpop.permute.xlu0 %522
  %v525 = vmul.f32 %v523, %v136
  %526 = vset.pattern.permute.xlu0 12
  %527 = vperm.xlu0 %526, %v462
  %v528 = vpop.permute.xlu0 %527
  %v530 = vmul.f32 %v528, %v138
  %531 = vset.pattern.permute.xlu0 13
  %532 = vperm.xlu0 %531, %v462
  %v533 = vpop.permute.xlu0 %532
  %v535 = vmul.f32 %v533, %v140
  %536 = vset.pattern.permute.xlu0 14
  %537 = vperm.xlu0 %536, %v462
  %v538 = vpop.permute.xlu0 %537
  %v540 = vmul.f32 %v538, %v142
  %541 = vset.pattern.permute.xlu0 15
  %542 = vperm.xlu0 %541, %v462
  %v543 = vpop.permute.xlu0 %542
  %v545 = vmul.f32 %v543, %v144
  %v546 = vadd.f32 %v464, %v470
  %v547 = vadd.f32 %v475, %v480
  %v548 = vadd.f32 %v485, %v490
  %v549 = vadd.f32 %v495, %v500
  %v550 = vadd.f32 %v505, %v510
  %v551 = vadd.f32 %v515, %v520
  %v552 = vadd.f32 %v525, %v530
  %v553 = vadd.f32 %v535, %v540
  %v554 = vadd.f32 %v546, %v547
  %v555 = vadd.f32 %v548, %v549
  %v556 = vadd.f32 %v550, %v551
  %v557 = vadd.f32 %v552, %v553
  %v558 = vadd.f32 %v554, %v555
  %v559 = vadd.f32 %v556, %v557
  %v560 = vadd.f32 %v558, %v559
  %v561 = vadd.f32 %v560, %v545
  %v562 = vtanh.pop %v561
  %s563 = scalar_lea.vmem [#allocation2], 10
  %v564 = vld [vmem:[%s563] sm:$0x3]
  %566 = vset.pattern.permute.xlu0 0
  %567 = vperm.xlu0 %566, %v562
  %v568 = vpop.permute.xlu0 %567
  %v570 = vmul.f32 %v568, %v114
  %571 = vset.pattern.permute.xlu0 1
  %572 = vperm.xlu0 %571, %v562
  %v573 = vpop.permute.xlu0 %572
  %v575 = vmul.f32 %v573, %v116
  %576 = vset.pattern.permute.xlu0 2
  %577 = vperm.xlu0 %576, %v562
  %v578 = vpop.permute.xlu0 %577
  %v580 = vmul.f32 %v578, %v118
  %581 = vset.pattern.permute.xlu0 3
  %582 = vperm.xlu0 %581, %v562
  %v583 = vpop.permute.xlu0 %582
  %v585 = vmul.f32 %v583, %v120
  %586 = vset.pattern.permute.xlu0 4
  %587 = vperm.xlu0 %586, %v562
  %v588 = vpop.permute.xlu0 %587
  %v590 = vmul.f32 %v588, %v122
  %591 = vset.pattern.permute.xlu0 5
  %592 = vperm.xlu0 %591, %v562
  %v593 = vpop.permute.xlu0 %592
  %v595 = vmul.f32 %v593, %v124
  %596 = vset.pattern.permute.xlu0 6
  %597 = vperm.xlu0 %596, %v562
  %v598 = vpop.permute.xlu0 %597
  %v600 = vmul.f32 %v598, %v126
  %601 = vset.pattern.permute.xlu0 7
  %602 = vperm.xlu0 %601, %v562
  %v603 = vpop.permute.xlu0 %602
  %v605 = vmul.f32 %v603, %v128
  %606 = vset.pattern.permute.xlu0 8
  %607 = vperm.xlu0 %606, %v562
  %v608 = vpop.permute.xlu0 %607
  %v610 = vmul.f32 %v608, %v130
  %611 = vset.pattern.permute.xlu0 9
  %612 = vperm.xlu0 %611, %v562
  %v613 = vpop.permute.xlu0 %612
  %v615 = vmul.f32 %v613, %v132
  %616 = vset.pattern.permute.xlu0 10
  %617 = vperm.xlu0 %616, %v562
  %v618 = vpop.permute.xlu0 %617
  %v620 = vmul.f32 %v618, %v134
  %621 = vset.pattern.permute.xlu0 11
  %622 = vperm.xlu0 %621, %v562
  %v623 = vpop.permute.xlu0 %622
  %v625 = vmul.f32 %v623, %v136
  %626 = vset.pattern.permute.xlu0 12
  %627 = vperm.xlu0 %626, %v562
  %v628 = vpop.permute.xlu0 %627
  %v630 = vmul.f32 %v628, %v138
  %631 = vset.pattern.permute.xlu0 13
  %632 = vperm.xlu0 %631, %v562
  %v633 = vpop.permute.xlu0 %632
  %v635 = vmul.f32 %v633, %v140
  %636 = vset.pattern.permute.xlu0 14
  %637 = vperm.xlu0 %636, %v562
  %v638 = vpop.permute.xlu0 %637
  %v640 = vmul.f32 %v638, %v142
  %641 = vset.pattern.permute.xlu0 15
  %642 = vperm.xlu0 %641, %v562
  %v643 = vpop.permute.xlu0 %642
  %v645 = vmul.f32 %v643, %v144
  %v646 = vadd.f32 %v564, %v570
  %v647 = vadd.f32 %v575, %v580
  %v648 = vadd.f32 %v585, %v590
  %v649 = vadd.f32 %v595, %v600
  %v650 = vadd.f32 %v605, %v610
  %v651 = vadd.f32 %v615, %v620
  %v652 = vadd.f32 %v625, %v630
  %v653 = vadd.f32 %v635, %v640
  %v654 = vadd.f32 %v646, %v647
  %v655 = vadd.f32 %v648, %v649
  %v656 = vadd.f32 %v650, %v651
  %v657 = vadd.f32 %v652, %v653
  %v658 = vadd.f32 %v654, %v655
  %v659 = vadd.f32 %v656, %v657
  %v660 = vadd.f32 %v658, %v659
  %v661 = vadd.f32 %v660, %v645
  %v662 = vtanh.pop %v661
  %s663 = scalar_lea.vmem [#allocation2], 12
  %v664 = vld [vmem:[%s663] sm:$0x3]
  %666 = vset.pattern.permute.xlu0 0
  %667 = vperm.xlu0 %666, %v662
  %v668 = vpop.permute.xlu0 %667
  %v670 = vmul.f32 %v668, %v114
  %671 = vset.pattern.permute.xlu0 1
  %672 = vperm.xlu0 %671, %v662
  %v673 = vpop.permute.xlu0 %672
  %v675 = vmul.f32 %v673, %v116
  %676 = vset.pattern.permute.xlu0 2
  %677 = vperm.xlu0 %676, %v662
  %v678 = vpop.permute.xlu0 %677
  %v680 = vmul.f32 %v678, %v118
  %681 = vset.pattern.permute.xlu0 3
  %682 = vperm.xlu0 %681, %v662
  %v683 = vpop.permute.xlu0 %682
  %v685 = vmul.f32 %v683, %v120
  %686 = vset.pattern.permute.xlu0 4
  %687 = vperm.xlu0 %686, %v662
  %v688 = vpop.permute.xlu0 %687
  %v690 = vmul.f32 %v688, %v122
  %691 = vset.pattern.permute.xlu0 5
  %692 = vperm.xlu0 %691, %v662
  %v693 = vpop.permute.xlu0 %692
  %v695 = vmul.f32 %v693, %v124
  %696 = vset.pattern.permute.xlu0 6
  %697 = vperm.xlu0 %696, %v662
  %v698 = vpop.permute.xlu0 %697
  %v700 = vmul.f32 %v698, %v126
  %701 = vset.pattern.permute.xlu0 7
  %702 = vperm.xlu0 %701, %v662
  %v703 = vpop.permute.xlu0 %702
  %v705 = vmul.f32 %v703, %v128
  %706 = vset.pattern.permute.xlu0 8
  %707 = vperm.xlu0 %706, %v662
  %v708 = vpop.permute.xlu0 %707
  %v710 = vmul.f32 %v708, %v130
  %711 = vset.pattern.permute.xlu0 9
  %712 = vperm.xlu0 %711, %v662
  %v713 = vpop.permute.xlu0 %712
  %v715 = vmul.f32 %v713, %v132
  %716 = vset.pattern.permute.xlu0 10
  %717 = vperm.xlu0 %716, %v662
  %v718 = vpop.permute.xlu0 %717
  %v720 = vmul.f32 %v718, %v134
  %721 = vset.pattern.permute.xlu0 11
  %722 = vperm.xlu0 %721, %v662
  %v723 = vpop.permute.xlu0 %722
  %v725 = vmul.f32 %v723, %v136
  %726 = vset.pattern.permute.xlu0 12
  %727 = vperm.xlu0 %726, %v662
  %v728 = vpop.permute.xlu0 %727
  %v730 = vmul.f32 %v728, %v138
  %731 = vset.pattern.permute.xlu0 13
  %732 = vperm.xlu0 %731, %v662
  %v733 = vpop.permute.xlu0 %732
  %v735 = vmul.f32 %v733, %v140
  %736 = vset.pattern.permute.xlu0 14
  %737 = vperm.xlu0 %736, %v662
  %v738 = vpop.permute.xlu0 %737
  %v740 = vmul.f32 %v738, %v142
  %741 = vset.pattern.permute.xlu0 15
  %742 = vperm.xlu0 %741, %v662
  %v743 = vpop.permute.xlu0 %742
  %v745 = vmul.f32 %v743, %v144
  %v746 = vadd.f32 %v664, %v670
  %v747 = vadd.f32 %v675, %v680
  %v748 = vadd.f32 %v685, %v690
  %v749 = vadd.f32 %v695, %v700
  %v750 = vadd.f32 %v705, %v710
  %v751 = vadd.f32 %v715, %v720
  %v752 = vadd.f32 %v725, %v730
  %v753 = vadd.f32 %v735, %v740
  %v754 = vadd.f32 %v746, %v747
  %v755 = vadd.f32 %v748, %v749
  %v756 = vadd.f32 %v750, %v751
  %v757 = vadd.f32 %v752, %v753
  %v758 = vadd.f32 %v754, %v755
  %v759 = vadd.f32 %v756, %v757
  %v760 = vadd.f32 %v758, %v759
  %v761 = vadd.f32 %v760, %v745
  %v762 = vtanh.pop %v761
  %s763 = scalar_lea.vmem [#allocation2], 14
  %v764 = vld [vmem:[%s763] sm:$0x3]
  %766 = vset.pattern.permute.xlu0 0
  %767 = vperm.xlu0 %766, %v762
  %v768 = vpop.permute.xlu0 %767
  %v770 = vmul.f32 %v768, %v114
  %771 = vset.pattern.permute.xlu0 1
  %772 = vperm.xlu0 %771, %v762
  %v773 = vpop.permute.xlu0 %772
  %v775 = vmul.f32 %v773, %v116
  %776 = vset.pattern.permute.xlu0 2
  %777 = vperm.xlu0 %776, %v762
  %v778 = vpop.permute.xlu0 %777
  %v780 = vmul.f32 %v778, %v118
  %781 = vset.pattern.permute.xlu0 3
  %782 = vperm.xlu0 %781, %v762
  %v783 = vpop.permute.xlu0 %782
  %v785 = vmul.f32 %v783, %v120
  %786 = vset.pattern.permute.xlu0 4
  %787 = vperm.xlu0 %786, %v762
  %v788 = vpop.permute.xlu0 %787
  %v790 = vmul.f32 %v788, %v122
  %791 = vset.pattern.permute.xlu0 5
  %792 = vperm.xlu0 %791, %v762
  %v793 = vpop.permute.xlu0 %792
  %v795 = vmul.f32 %v793, %v124
  %796 = vset.pattern.permute.xlu0 6
  %797 = vperm.xlu0 %796, %v762
  %v798 = vpop.permute.xlu0 %797
  %v800 = vmul.f32 %v798, %v126
  %801 = vset.pattern.permute.xlu0 7
  %802 = vperm.xlu0 %801, %v762
  %v803 = vpop.permute.xlu0 %802
  %v805 = vmul.f32 %v803, %v128
  %806 = vset.pattern.permute.xlu0 8
  %807 = vperm.xlu0 %806, %v762
  %v808 = vpop.permute.xlu0 %807
  %v810 = vmul.f32 %v808, %v130
  %811 = vset.pattern.permute.xlu0 9
  %812 = vperm.xlu0 %811, %v762
  %v813 = vpop.permute.xlu0 %812
  %v815 = vmul.f32 %v813, %v132
  %816 = vset.pattern.permute.xlu0 10
  %817 = vperm.xlu0 %816, %v762
  %v818 = vpop.permute.xlu0 %817
  %v820 = vmul.f32 %v818, %v134
  %821 = vset.pattern.permute.xlu0 11
  %822 = vperm.xlu0 %821, %v762
  %v823 = vpop.permute.xlu0 %822
  %v825 = vmul.f32 %v823, %v136
  %826 = vset.pattern.permute.xlu0 12
  %827 = vperm.xlu0 %826, %v762
  %v828 = vpop.permute.xlu0 %827
  %v830 = vmul.f32 %v828, %v138
  %831 = vset.pattern.permute.xlu0 13
  %832 = vperm.xlu0 %831, %v762
  %v833 = vpop.permute.xlu0 %832
  %v835 = vmul.f32 %v833, %v140
  %836 = vset.pattern.permute.xlu0 14
  %837 = vperm.xlu0 %836, %v762
  %v838 = vpop.permute.xlu0 %837
  %v840 = vmul.f32 %v838, %v142
  %841 = vset.pattern.permute.xlu0 15
  %842 = vperm.xlu0 %841, %v762
  %v843 = vpop.permute.xlu0 %842
  %v845 = vmul.f32 %v843, %v144
  %v846 = vadd.f32 %v764, %v770
  %v847 = vadd.f32 %v775, %v780
  %v848 = vadd.f32 %v785, %v790
  %v849 = vadd.f32 %v795, %v800
  %v850 = vadd.f32 %v805, %v810
  %v851 = vadd.f32 %v815, %v820
  %v852 = vadd.f32 %v825, %v830
  %v853 = vadd.f32 %v835, %v840
  %v854 = vadd.f32 %v846, %v847
  %v855 = vadd.f32 %v848, %v849
  %v856 = vadd.f32 %v850, %v851
  %v857 = vadd.f32 %v852, %v853
  %v858 = vadd.f32 %v854, %v855
  %v859 = vadd.f32 %v856, %v857
  %v860 = vadd.f32 %v858, %v859
  %v861 = vadd.f32 %v860, %v845
  %v862 = vtanh.pop %v861
  %v863 = vld [vmem:[%s5] sm:$0xff]
  %v864 = vld [vmem:[%s5 + $0x8] sm:$0xff]
  %v865 = vld [vmem:[#allocation3] sm:$0x1]
  %v867 = vperm.slane %v865, 0
  %vm869 = vcmask 130048
  %v871 = vsel %vm869, %v862, 0
  %873 = vmatpush.msra.mxu0 0.0
  %874 = vmatpush.msra.mxu0 0.0
  %875 = vmatpush.msra.mxu0 0.0
  %876 = vmatpush.msra.mxu0 0.0
  %877 = vmatpush.msra.mxu0 0.0
  %878 = vmatpush.msra.mxu0 0.0
  %879 = vmatpush.msra.mxu0 0.0
  %880 = vmatpush.msra.mxu0 0.0
  %881 = vmatpush.msra.mxu0 0.0
  %882 = vmatpush.msra.mxu0 0.0
  %883 = vmatpush.msra.mxu0 0.0
  %884 = vmatpush.msra.mxu0 0.0
  %885 = vmatpush.msra.mxu0 0.0
  %886 = vmatpush.msra.mxu0 0.0
  %887 = vmatpush.msra.mxu0 %v864
  %888 = vmatpush.msra.mxu0 %v863
  %889 = vmatmul.f32.gmra.mxu0 %v871
  %v890 = vpop.f32.mrf.mxu0
  %v891 = vadd.f32 %v867, %v890
  %892 = vdwg.mxu0
  %vm893 = vcmask 1024
  %894 = vst.msk [vmem:[%s7] sm:$0x3] %vm893, %v891
  // Predicated region
  $region30: #{simple_rnn_forward.1} parent=0 // pred_check
    _
  $region31: #{simple_rnn_forward.1} parent=0 // pred_check_branch
    %896 = sbr.rel (0) target = $region33
  $region32: #{simple_rnn_forward.1} parent=0 // pred_region
    _
  $region33: #{simple_rnn_forward.1} parent=0 // pred_fallthru
    _
  // Predicated region
  $region34: #{simple_rnn_forward.1} parent=0 // pred_check
    _
  $region35: #{simple_rnn_forward.1} parent=0 // pred_check_branch
    %898 = sbr.rel (0) target = $region37
  $region36: #{simple_rnn_forward.1} parent=0 // pred_region
    _
  $region37: #{simple_rnn_forward.1} parent=0 // pred_fallthru
    _

</llo_original>
